<compile_context>
chip_gen: v6e
topology: v6e:2x2x1
jax: 0.10.0
libtpu: 0.0.40
codegen_flags: <defaults>
</compile_context>

<pallas_src>
import functools

import jax
import jax.numpy as jnp
import numpy as np
from jax.experimental import pallas as pl
from jax.experimental.pallas import tpu as pltpu

WIN = 7
K1 = 0.01
K2 = 0.03
DATA_RANGE = 255.0


# --------------------------------------------------------------------------------------
# Kernel
# --------------------------------------------------------------------------------------
def _gen_loss_kernel(bw_ref, bh_ref, gen_ref, tgt_ref, rec_ref, ssim_ref,
                     acc_rec, acc_ssim, *, hw, inv_rec_n, inv_ssim_n):
    i = pl.program_id(1)                     # reduction step within this split
    nsteps = pl.num_programs(1)

    @pl.when(i == 0)
    def _init():
        acc_rec[...] = jnp.zeros_like(acc_rec)
        acc_ssim[...] = jnp.zeros_like(acc_ssim)

    # Single HBM read of each tile; upcast to f32 in VMEM (inputs may be bf16).
    x = gen_ref[...].astype(jnp.float32)     # (tbt, C*H*W)  -- lane-dense
    y = tgt_ref[...].astype(jnp.float32)

    # ---- reconstruction partials: fused sum(|d| + d^2), kept lane-wise --------------
    d = x - y
    r = jnp.abs(d) + d * d
    acc_rec[...] = acc_rec[...] + jnp.sum(r, axis=0, keepdims=True)   # (1, C*H*W)

    # ---- SSIM partials on channel 0, scaled to [0, 255], centered at 127.5 ----------
    # Channel 0 is the leading H*W lanes of each row (aligned static lane slice).
    m0 = 0.5 * DATA_RANGE
    v1 = x[:, :hw] * DATA_RANGE - m0         # (tbt, H*W)
    v2 = y[:, :hw] * DATA_RANGE - m0

    bw = bw_ref[...]                          # (H*W,  H*wv)   resident 0/1 band
    bh = bh_ref[...]                          # (H*wv, hv*wv)  resident 0/1 band
    inv_win = 1.0 / (WIN * WIN)

    def box_mean(m):
        # Separable valid 7x7 box mean as two big matmuls against the resident bands.
        p = jnp.dot(m, bw, preferred_element_type=jnp.float32)        # (tbt, H*wv)
        return jnp.dot(p, bh, preferred_element_type=jnp.float32) * inv_win

    u1 = box_mean(v1)
    u2 = box_mean(v2)
    u11 = box_mean(v1 * v1)
    u22 = box_mean(v2 * v2)
    u12 = box_mean(v1 * v2)

    cov_norm = (WIN * WIN) / (WIN * WIN - 1.0)    # sample covariance (skimage default)
    vx = cov_norm * (u11 - u1 * u1)
    vy = cov_norm * (u22 - u2 * u2)
    vxy = cov_norm * (u12 - u1 * u2)

    ux = u1 + m0
    uy = u2 + m0
    c1 = (K1 * DATA_RANGE) ** 2
    c2 = (K2 * DATA_RANGE) ** 2
    num = (2.0 * ux * uy + c1) * (2.0 * vxy + c2)
    den = (ux * ux + uy * uy + c1) * (vx + vy + c2)
    s = num / den                                    # (tbt, hv*wv)
    acc_ssim[...] = acc_ssim[...] + jnp.sum(s, axis=0, keepdims=True)

    # ---- finalize: single cross-lane reduce, per split --------------------------------
    @pl.when(i == nsteps - 1)
    def _finalize():
        rec_total = jnp.sum(acc_rec[...]) * inv_rec_n
        ssim_total = jnp.sum(acc_ssim[...]) * inv_ssim_n
        rec_ref[...] = jnp.broadcast_to(rec_total, rec_ref.shape)
        ssim_ref[...] = jnp.broadcast_to(ssim_total, ssim_ref.shape)


# --------------------------------------------------------------------------------------
# Wrapper helpers
# --------------------------------------------------------------------------------------
def _flat_bands(h, w):
    """Flattened-HW 0/1 band matrices for the separable valid 7x7 box filter."""
    hv, wv = h - WIN + 1, w - WIN + 1
    iw = np.arange(w)[:, None] - np.arange(wv)[None, :]
    band_w = ((iw >= 0) & (iw < WIN)).astype(np.float32)           # (W, wv)
    ih = np.arange(h)[:, None] - np.arange(hv)[None, :]
    band_h = ((ih >= 0) & (ih < WIN)).astype(np.float32)           # (H, hv)
    bw = np.kron(np.eye(h, dtype=np.float32), band_w)              # (H*W,  H*wv)
    bh = np.kron(band_h, np.eye(wv, dtype=np.float32))             # (H*wv, hv*wv)
    return jnp.asarray(bw), jnp.asarray(bh)


def _vmem_budget():
    """(vmem_limit_bytes, working-set budget) sized per TPU generation."""
    cap = None
    try:
        info = pltpu.get_tpu_info()
        cap = getattr(info, "vmem_capacity_bytes", None)
    except Exception:
        cap = None
    if cap:
        limit = int(min(max(cap // 2, 16 * 1024 * 1024), 64 * 1024 * 1024))
    else:
        limit = 32 * 1024 * 1024          # safe default on every generation
    work = (limit * 3) // 5
    return limit, work


def _pick_block_bt(bt, chw, hw, hwv, hvwv, itemsize, budget):
    """Largest legal tile (multiple of 8, divisor of BT) fitting the VMEM budget."""
    per_img = (2 * 2 * chw * itemsize      # double-buffered input tiles (gen + tgt)
               + 6 * chw * 4               # f32 upcasts, diff, |d|+d^2 temporaries
               + 8 * hw * 4                # centered channel-0 maps and their products
               + 6 * hwv * 4               # W-pass matmul intermediates
               + 14 * hvwv * 4)            # box means + variance / SSIM temporaries
    tbt = max(1, budget // max(per_img, 1))
    tbt = min(tbt, bt)
    if bt % 8 == 0:
        tbt = max(8, (tbt // 8) * 8)
        while bt % tbt:
            tbt -= 8
    else:
        tbt = bt                           # single step; block equals the full extent
    return int(tbt)


# --------------------------------------------------------------------------------------
# Public entry point
# --------------------------------------------------------------------------------------
def _generator_loss(gen_img, target, gen_D, *, block_bt=None):
    """gen_img/target: [B, T, C, H, W] in [0,1]; gen_D: [B, 1] (any float dtype)."""
    B, T, C, H, W = gen_img.shape
    if H < WIN or W < WIN:
        raise ValueError(f"SSIM needs H, W >= {WIN}; got H={H}, W={W}")
    BT = B * T
    HW = H * W
    CHW = C * HW
    hv, wv = H - WIN + 1, W - WIN + 1
    HWV = H * wv
    HVWV = hv * wv

    vmem_limit, work_budget = _vmem_budget()
    band_bytes = (HW * HWV + HWV * HVWV) * 4            # resident band matrices
    work_budget = max(work_budget - band_bytes, 1 << 20)

    if block_bt is None:
        tbt = _pick_block_bt(BT, CHW, HW, HWV, HVWV, gen_img.dtype.itemsize, work_budget)
    else:
        tbt = max(1, min(int(block_bt), BT))
        if tbt != BT:
            if BT % 8 == 0:
                tbt = max(8, (tbt // 8) * 8)
                while BT % tbt:
                    tbt -= 8
            else:
                tbt = BT

    nsteps = BT // tbt
    splits = 2 if (nsteps % 2 == 0 and nsteps >= 2) else 1   # megacore split on v7x
    n_in = nsteps // splits

    gen2 = gen_img.reshape(BT, CHW)                     # lane-dense layout
    tgt2 = target.reshape(BT, CHW)
    bw, bh = _flat_bands(H, W)

    kernel = functools.partial(
        _gen_loss_kernel,
        hw=HW,
        inv_rec_n=1.0 / float(BT * CHW),
        inv_ssim_n=1.0 / float(BT * HVWV),
    )

    rec, ssim_v = pl.pallas_call(
        kernel,
        grid=(splits, n_in),
        in_specs=[
            pl.BlockSpec((HW, HWV), lambda s, i: (0, 0)),          # resident band (W-pass)
            pl.BlockSpec((HWV, HVWV), lambda s, i: (0, 0)),        # resident band (H-pass)
            pl.BlockSpec((tbt, CHW), lambda s, i, n=n_in: (s * n + i, 0)),
            pl.BlockSpec((tbt, CHW), lambda s, i, n=n_in: (s * n + i, 0)),
        ],
        out_specs=(
            pl.BlockSpec((1, 8, 128), lambda s, i: (s, 0, 0)),
            pl.BlockSpec((1, 8, 128), lambda s, i: (s, 0, 0)),
        ),
        out_shape=(
            jax.ShapeDtypeStruct((splits, 8, 128), jnp.float32),
            jax.ShapeDtypeStruct((splits, 8, 128), jnp.float32),
        ),
        scratch_shapes=[
            pltpu.VMEM((1, CHW), jnp.float32),                     # lane-wise rec partials
            pltpu.VMEM((1, HVWV), jnp.float32),                    # lane-wise SSIM partials
        ],
        compiler_params=pltpu.CompilerParams(
            dimension_semantics=("parallel", "arbitrary"),
            vmem_limit_bytes=vmem_limit,
        ),
    )(bw, bh, gen2, tgt2)

    # Per-split partial losses are already scaled by the global 1/N -> just sum splits.
    l_rec = jnp.sum(rec[:, 0, 0])
    l_ssim = jnp.sum(ssim_v[:, 0, 0])
    # O(B) scalar work stays in the wrapper (per perf review).
    l_adv = -jnp.mean(gen_D.astype(jnp.float32))
    l_total = l_rec + 0.01 * (1.0 - l_ssim) + 0.0001 * l_adv
    return l_total, l_rec, l_ssim, l_adv


generator_loss = jax.jit(_generator_loss, static_argnames=("block_bt",))


# ----------------------------- reference (numpy, float64) -----------------------------
def _box_mean_np(m):
    hv, wv = m.shape[0] - WIN + 1, m.shape[1] - WIN + 1
    row = sum(m[:, dx:dx + wv] for dx in range(WIN))
    box = sum(row[dy:dy + hv, :] for dy in range(WIN))
    return box / float(WIN * WIN)


def _ssim_np(a, b):
    ux, uy = _box_mean_np(a), _box_mean_np(b)
    uxx, uyy, uxy = _box_mean_np(a * a), _box_mean_np(b * b), _box_mean_np(a * b)
    cov_norm = (WIN * WIN) / (WIN * WIN - 1.0)
    vx = cov_norm * (uxx - ux * ux)
    vy = cov_norm * (uyy - uy * uy)
    vxy = cov_norm * (uxy - ux * uy)
    c1 = (K1 * DATA_RANGE) ** 2
    c2 = (K2 * DATA_RANGE) ** 2
    s = ((2 * ux * uy + c1) * (2 * vxy + c2)) / ((ux * ux + uy * uy + c1) * (vx + vy + c2))
    return s.mean()


def _reference(gen_img, target, gen_D):
    x = np.asarray(gen_img, np.float64)
    y = np.asarray(target, np.float64)
    d = np.asarray(gen_D, np.float64)
    diff = x - y
    l_rec = np.mean(np.abs(diff)) + np.mean(diff ** 2)
    B, T, C, H, W = x.shape
    ssim_value = 0.0
    for i in range(B):
        seq = 0.0
        for k in range(T):
            seq += _ssim_np(x[i, k, 0] * 255.0, y[i, k, 0] * 255.0)
        ssim_value += seq / T
    l_ssim = ssim_value / B
    l_adv = -d.mean()
    l_total = l_rec + 0.01 * (1.0 - l_ssim) + 0.0001 * l_adv
    return l_total, l_rec, l_ssim, l_adv


if __name__ == "__main__":
    key = jax.random.PRNGKey(0)
    k1, k2, k3 = jax.random.split(key, 3)

    B, T, C, H, W = 2, 16, 3, 16, 16
    gen_img = jax.random.uniform(k1, (B, T, C, H, W), jnp.float32)
    target = jax.random.uniform(k2, (B, T, C, H, W), jnp.float32)
    gen_D = jax.random.normal(k3, (B, 1), jnp.float32)

    # block_bt=8 -> BT=32 gives a (2, 2) grid: exercises both the 2-way parallel split
    # and the cross-step accumulation path.
    outs = generator_loss(gen_img, target, gen_D, block_bt=8)
    jax.block_until_ready(outs)
    l_total, l_rec, l_ssim, l_adv = [float(v) for v in outs]

    ref_total, ref_rec, ref_ssim, ref_adv = _reference(
        np.asarray(gen_img), np.asarray(target), np.asarray(gen_D))
    np.testing.assert_allclose(l_rec, ref_rec, rtol=1e-3, atol=1e-4)
    np.testing.assert_allclose(l_ssim, ref_ssim, rtol=1e-3, atol=1e-3)
    np.testing.assert_allclose(l_adv, ref_adv, rtol=1e-3, atol=1e-4)
    np.testing.assert_allclose(l_total, ref_total, rtol=1e-3, atol=1e-3)

    print("KERNEL_OK")
</pallas_src>

<mosaic_0001>
module attributes {stable_mosaic.version = 11 : i64} {
  func.func @_gen_loss_kernel(%arg0: i32, %arg1: i32, %arg2: memref<256x160xf32, #tpu.memory_space<vmem>>, %arg3: memref<160x100xf32, #tpu.memory_space<vmem>>, %arg4: memref<8x768xf32, #tpu.memory_space<vmem>>, %arg5: memref<8x768xf32, #tpu.memory_space<vmem>>, %arg6: memref<1x8x128xf32, #tpu.memory_space<vmem>>, %arg7: memref<1x8x128xf32, #tpu.memory_space<vmem>>, %arg8: memref<1x768xf32, #tpu.memory_space<vmem>>, %arg9: memref<1x100xf32, #tpu.memory_space<vmem>>) attributes {dimension_semantics = [#tpu.dimension_semantics<parallel>, #tpu.dimension_semantics<arbitrary>], iteration_bounds = array<i64: 2, 2>, scalar_prefetch = 0 : i64, scratch_operands = 2 : i64, tpu.core_type = #tpu.core_type<tc>, window_params = [{pipeline_mode = #tpu.pipeline_mode<synchronous>, transform_indices = @transform_0, window_bounds = array<i64: 256, 160>}, {pipeline_mode = #tpu.pipeline_mode<synchronous>, transform_indices = @transform_1, window_bounds = array<i64: 160, 100>}, {transform_indices = @transform_2, window_bounds = array<i64: 8, 768>}, {transform_indices = @transform_3, window_bounds = array<i64: 8, 768>}, {transform_indices = @transform_4, window_bounds = array<i64: 1, 8, 128>}, {transform_indices = @transform_5, window_bounds = array<i64: 1, 8, 128>}]} {
    %c0_i32 = arith.constant 0 : i32
    %0 = arith.cmpi eq, %arg1, %c0_i32 : i32
    %1 = arith.extui %0 : i1 to i32
    %c0_i32_0 = arith.constant 0 : i32
    %2 = arith.cmpi ne, %1, %c0_i32_0 : i32
    scf.if %2 {
      %cst_48 = arith.constant 0.000000e+00 : f32
      %93 = vector.broadcast %cst_48 : f32 to vector<1x768xf32>
      %c0_49 = arith.constant 0 : index
      %c0_50 = arith.constant 0 : index
      %94 = vector.load %arg8[%c0_49, %c0_50] : memref<1x768xf32, #tpu.memory_space<vmem>>, vector<1x768xf32>
      tpu.vector_store %arg8[%c0_49, %c0_50], %93 {strides = array<i32>} : memref<1x768xf32, #tpu.memory_space<vmem>>, vector<1x768xf32>,
      %cst_51 = arith.constant 0.000000e+00 : f32
      %95 = vector.broadcast %cst_51 : f32 to vector<1x100xf32>
      %c0_52 = arith.constant 0 : index
      %c0_53 = arith.constant 0 : index
      %96 = vector.load %arg9[%c0_52, %c0_53] : memref<1x100xf32, #tpu.memory_space<vmem>>, vector<1x100xf32>
      tpu.vector_store %arg9[%c0_52, %c0_53], %95 {strides = array<i32>} : memref<1x100xf32, #tpu.memory_space<vmem>>, vector<1x100xf32>,
    } else {
    }
    %c0 = arith.constant 0 : index
    %c0_1 = arith.constant 0 : index
    %3 = vector.load %arg4[%c0, %c0_1] : memref<8x768xf32, #tpu.memory_space<vmem>>, vector<8x768xf32>
    %c0_2 = arith.constant 0 : index
    %c0_3 = arith.constant 0 : index
    %4 = vector.load %arg5[%c0_2, %c0_3] : memref<8x768xf32, #tpu.memory_space<vmem>>, vector<8x768xf32>
    %5 = arith.subf %3, %4 : vector<8x768xf32>
    %6 = math.absf %5 : vector<8x768xf32>
    %7 = arith.mulf %5, %5 : vector<8x768xf32>
    %8 = arith.addf %6, %7 : vector<8x768xf32>
    %c0_4 = arith.constant 0 : index
    %c0_5 = arith.constant 0 : index
    %9 = vector.load %arg8[%c0_4, %c0_5] : memref<1x768xf32, #tpu.memory_space<vmem>>, vector<1x768xf32>
    %cst = arith.constant dense<0.000000e+00> : vector<768xf32>
    %10 = vector.multi_reduction <add>, %8, %cst [0] : vector<8x768xf32> to vector<768xf32>
    %11 = vector.shape_cast %10 : vector<768xf32> to vector<1x768xf32>
    %12 = arith.addf %9, %11 : vector<1x768xf32>
    %c0_6 = arith.constant 0 : index
    %c0_7 = arith.constant 0 : index
    %13 = vector.load %arg8[%c0_6, %c0_7] : memref<1x768xf32, #tpu.memory_space<vmem>>, vector<1x768xf32>
    tpu.vector_store %arg8[%c0_6, %c0_7], %12 {strides = array<i32>} : memref<1x768xf32, #tpu.memory_space<vmem>>, vector<1x768xf32>,
    %14 = vector.extract_strided_slice %3 {offsets = [0, 0], sizes = [8, 256], strides = [1, 1]} : vector<8x768xf32> to vector<8x256xf32>
    %cst_8 = arith.constant 2.550000e+02 : f32
    %15 = vector.broadcast %cst_8 : f32 to vector<8x256xf32>
    %16 = arith.mulf %14, %15 : vector<8x256xf32>
    %cst_9 = arith.constant 1.275000e+02 : f32
    %17 = vector.broadcast %cst_9 : f32 to vector<8x256xf32>
    %18 = arith.subf %16, %17 : vector<8x256xf32>
    %19 = vector.extract_strided_slice %4 {offsets = [0, 0], sizes = [8, 256], strides = [1, 1]} : vector<8x768xf32> to vector<8x256xf32>
    %cst_10 = arith.constant 2.550000e+02 : f32
    %20 = vector.broadcast %cst_10 : f32 to vector<8x256xf32>
    %21 = arith.mulf %19, %20 : vector<8x256xf32>
    %cst_11 = arith.constant 1.275000e+02 : f32
    %22 = vector.broadcast %cst_11 : f32 to vector<8x256xf32>
    %23 = arith.subf %21, %22 : vector<8x256xf32>
    %c0_12 = arith.constant 0 : index
    %c0_13 = arith.constant 0 : index
    %24 = vector.load %arg2[%c0_12, %c0_13] : memref<256x160xf32, #tpu.memory_space<vmem>>, vector<256x160xf32>
    %c0_14 = arith.constant 0 : index
    %c0_15 = arith.constant 0 : index
    %25 = vector.load %arg3[%c0_14, %c0_15] : memref<160x100xf32, #tpu.memory_space<vmem>>, vector<160x100xf32>
    %cst_16 = arith.constant dense<0.000000e+00> : vector<8x160xf32>
    %26 = tpu.matmul %18, %24, %cst_16 {dimension_numbers = #tpu.dot_dimension_numbers<[1], [0], [0], [1], [0, 0, 1, 1], [], []>} : vector<8x256xf32>, vector<256x160xf32>, vector<8x160xf32> -> vector<8x160xf32>
    %cst_17 = arith.constant dense<0.000000e+00> : vector<8x100xf32>
    %27 = tpu.matmul %26, %25, %cst_17 {dimension_numbers = #tpu.dot_dimension_numbers<[1], [0], [0], [1], [0, 0, 1, 1], [], []>} : vector<8x160xf32>, vector<160x100xf32>, vector<8x100xf32> -> vector<8x100xf32>
    %cst_18 = arith.constant 0.0204081628 : f32
    %28 = vector.broadcast %cst_18 : f32 to vector<8x100xf32>
    %29 = arith.mulf %27, %28 : vector<8x100xf32>
    %cst_19 = arith.constant dense<0.000000e+00> : vector<8x160xf32>
    %30 = tpu.matmul %23, %24, %cst_19 {dimension_numbers = #tpu.dot_dimension_numbers<[1], [0], [0], [1], [0, 0, 1, 1], [], []>} : vector<8x256xf32>, vector<256x160xf32>, vector<8x160xf32> -> vector<8x160xf32>
    %cst_20 = arith.constant dense<0.000000e+00> : vector<8x100xf32>
    %31 = tpu.matmul %30, %25, %cst_20 {dimension_numbers = #tpu.dot_dimension_numbers<[1], [0], [0], [1], [0, 0, 1, 1], [], []>} : vector<8x160xf32>, vector<160x100xf32>, vector<8x100xf32> -> vector<8x100xf32>
    %cst_21 = arith.constant 0.0204081628 : f32
    %32 = vector.broadcast %cst_21 : f32 to vector<8x100xf32>
    %33 = arith.mulf %31, %32 : vector<8x100xf32>
    %34 = arith.mulf %18, %18 : vector<8x256xf32>
    %cst_22 = arith.constant dense<0.000000e+00> : vector<8x160xf32>
    %35 = tpu.matmul %34, %24, %cst_22 {dimension_numbers = #tpu.dot_dimension_numbers<[1], [0], [0], [1], [0, 0, 1, 1], [], []>} : vector<8x256xf32>, vector<256x160xf32>, vector<8x160xf32> -> vector<8x160xf32>
    %cst_23 = arith.constant dense<0.000000e+00> : vector<8x100xf32>
    %36 = tpu.matmul %35, %25, %cst_23 {dimension_numbers = #tpu.dot_dimension_numbers<[1], [0], [0], [1], [0, 0, 1, 1], [], []>} : vector<8x160xf32>, vector<160x100xf32>, vector<8x100xf32> -> vector<8x100xf32>
    %cst_24 = arith.constant 0.0204081628 : f32
    %37 = vector.broadcast %cst_24 : f32 to vector<8x100xf32>
    %38 = arith.mulf %36, %37 : vector<8x100xf32>
    %39 = arith.mulf %23, %23 : vector<8x256xf32>
    %cst_25 = arith.constant dense<0.000000e+00> : vector<8x160xf32>
    %40 = tpu.matmul %39, %24, %cst_25 {dimension_numbers = #tpu.dot_dimension_numbers<[1], [0], [0], [1], [0, 0, 1, 1], [], []>} : vector<8x256xf32>, vector<256x160xf32>, vector<8x160xf32> -> vector<8x160xf32>
    %cst_26 = arith.constant dense<0.000000e+00> : vector<8x100xf32>
    %41 = tpu.matmul %40, %25, %cst_26 {dimension_numbers = #tpu.dot_dimension_numbers<[1], [0], [0], [1], [0, 0, 1, 1], [], []>} : vector<8x160xf32>, vector<160x100xf32>, vector<8x100xf32> -> vector<8x100xf32>
    %cst_27 = arith.constant 0.0204081628 : f32
    %42 = vector.broadcast %cst_27 : f32 to vector<8x100xf32>
    %43 = arith.mulf %41, %42 : vector<8x100xf32>
    %44 = arith.mulf %18, %23 : vector<8x256xf32>
    %cst_28 = arith.constant dense<0.000000e+00> : vector<8x160xf32>
    %45 = tpu.matmul %44, %24, %cst_28 {dimension_numbers = #tpu.dot_dimension_numbers<[1], [0], [0], [1], [0, 0, 1, 1], [], []>} : vector<8x256xf32>, vector<256x160xf32>, vector<8x160xf32> -> vector<8x160xf32>
    %cst_29 = arith.constant dense<0.000000e+00> : vector<8x100xf32>
    %46 = tpu.matmul %45, %25, %cst_29 {dimension_numbers = #tpu.dot_dimension_numbers<[1], [0], [0], [1], [0, 0, 1, 1], [], []>} : vector<8x160xf32>, vector<160x100xf32>, vector<8x100xf32> -> vector<8x100xf32>
    %cst_30 = arith.constant 0.0204081628 : f32
    %47 = vector.broadcast %cst_30 : f32 to vector<8x100xf32>
    %48 = arith.mulf %46, %47 : vector<8x100xf32>
    %49 = arith.mulf %29, %29 : vector<8x100xf32>
    %50 = arith.subf %38, %49 : vector<8x100xf32>
    %cst_31 = arith.constant 1.02083337 : f32
    %51 = vector.broadcast %cst_31 : f32 to vector<8x100xf32>
    %52 = arith.mulf %51, %50 : vector<8x100xf32>
    %53 = arith.mulf %33, %33 : vector<8x100xf32>
    %54 = arith.subf %43, %53 : vector<8x100xf32>
    %cst_32 = arith.constant 1.02083337 : f32
    %55 = vector.broadcast %cst_32 : f32 to vector<8x100xf32>
    %56 = arith.mulf %55, %54 : vector<8x100xf32>
    %57 = arith.mulf %29, %33 : vector<8x100xf32>
    %58 = arith.subf %48, %57 : vector<8x100xf32>
    %cst_33 = arith.constant 1.02083337 : f32
    %59 = vector.broadcast %cst_33 : f32 to vector<8x100xf32>
    %60 = arith.mulf %59, %58 : vector<8x100xf32>
    %cst_34 = arith.constant 1.275000e+02 : f32
    %61 = vector.broadcast %cst_34 : f32 to vector<8x100xf32>
    %62 = arith.addf %29, %61 : vector<8x100xf32>
    %cst_35 = arith.constant 1.275000e+02 : f32
    %63 = vector.broadcast %cst_35 : f32 to vector<8x100xf32>
    %64 = arith.addf %33, %63 : vector<8x100xf32>
    %cst_36 = arith.constant 2.000000e+00 : f32
    %65 = vector.broadcast %cst_36 : f32 to vector<8x100xf32>
    %66 = arith.mulf %65, %62 : vector<8x100xf32>
    %67 = arith.mulf %66, %64 : vector<8x100xf32>
    %cst_37 = arith.constant 6.502500e+00 : f32
    %68 = vector.broadcast %cst_37 : f32 to vector<8x100xf32>
    %69 = arith.addf %67, %68 : vector<8x100xf32>
    %cst_38 = arith.constant 2.000000e+00 : f32
    %70 = vector.broadcast %cst_38 : f32 to vector<8x100xf32>
    %71 = arith.mulf %70, %60 : vector<8x100xf32>
    %cst_39 = arith.constant 5.852250e+01 : f32
    %72 = vector.broadcast %cst_39 : f32 to vector<8x100xf32>
    %73 = arith.addf %71, %72 : vector<8x100xf32>
    %74 = arith.mulf %69, %73 : vector<8x100xf32>
    %75 = arith.mulf %62, %62 : vector<8x100xf32>
    %76 = arith.mulf %64, %64 : vector<8x100xf32>
    %77 = arith.addf %75, %76 : vector<8x100xf32>
    %cst_40 = arith.constant 6.502500e+00 : f32
    %78 = vector.broadcast %cst_40 : f32 to vector<8x100xf32>
    %79 = arith.addf %77, %78 : vector<8x100xf32>
    %80 = arith.addf %52, %56 : vector<8x100xf32>
    %cst_41 = arith.constant 5.852250e+01 : f32
    %81 = vector.broadcast %cst_41 : f32 to vector<8x100xf32>
    %82 = arith.addf %80, %81 : vector<8x100xf32>
    %83 = arith.mulf %79, %82 : vector<8x100xf32>
    %84 = arith.divf %74, %83 : vector<8x100xf32>
    %c0_42 = arith.constant 0 : index
    %c0_43 = arith.constant 0 : index
    %85 = vector.load %arg9[%c0_42, %c0_43] : memref<1x100xf32, #tpu.memory_space<vmem>>, vector<1x100xf32>
    %cst_44 = arith.constant dense<0.000000e+00> : vector<100xf32>
    %86 = vector.multi_reduction <add>, %84, %cst_44 [0] : vector<8x100xf32> to vector<100xf32>
    %87 = vector.shape_cast %86 : vector<100xf32> to vector<1x100xf32>
    %88 = arith.addf %85, %87 : vector<1x100xf32>
    %c0_45 = arith.constant 0 : index
    %c0_46 = arith.constant 0 : index
    %89 = vector.load %arg9[%c0_45, %c0_46] : memref<1x100xf32, #tpu.memory_space<vmem>>, vector<1x100xf32>
    tpu.vector_store %arg9[%c0_45, %c0_46], %88 {strides = array<i32>} : memref<1x100xf32, #tpu.memory_space<vmem>>, vector<1x100xf32>,
    %c1_i32 = arith.constant 1 : i32
    %90 = arith.cmpi eq, %arg1, %c1_i32 : i32
    %91 = arith.extui %90 : i1 to i32
    %c0_i32_47 = arith.constant 0 : i32
    %92 = arith.cmpi ne, %91, %c0_i32_47 : i32
    scf.if %92 {
      %c0_48 = arith.constant 0 : index
      %c0_49 = arith.constant 0 : index
      %93 = vector.load %arg8[%c0_48, %c0_49] : memref<1x768xf32, #tpu.memory_space<vmem>>, vector<1x768xf32>
      %94 = vector.shape_cast %93 : vector<1x768xf32> to vector<1x1x768xf32>
      %cst_50 = arith.constant dense<0.000000e+00> : vector<1xf32>
      %95 = vector.multi_reduction <add>, %94, %cst_50 [1, 2] : vector<1x1x768xf32> to vector<1xf32>
      %96 = vector.shape_cast %95 : vector<1xf32> to vector<1x1x1xf32>
      %97 = vector.extract %96[0, 0, 0] : f32 from vector<1x1x1xf32>
      %cst_51 = arith.constant 4.06901054E-5 : f32
      %98 = arith.mulf %97, %cst_51 : f32
      %c0_52 = arith.constant 0 : index
      %c0_53 = arith.constant 0 : index
      %99 = vector.load %arg9[%c0_52, %c0_53] : memref<1x100xf32, #tpu.memory_space<vmem>>, vector<1x100xf32>
      %100 = vector.shape_cast %99 : vector<1x100xf32> to vector<1x1x100xf32>
      %cst_54 = arith.constant dense<0.000000e+00> : vector<1xf32>
      %101 = vector.multi_reduction <add>, %100, %cst_54 [1, 2] : vector<1x1x100xf32> to vector<1xf32>
      %102 = vector.shape_cast %101 : vector<1xf32> to vector<1x1x1xf32>
      %103 = vector.extract %102[0, 0, 0] : f32 from vector<1x1x1xf32>
      %cst_55 = arith.constant 3.125000e-04 : f32
      %104 = arith.mulf %103, %cst_55 : f32
      %105 = vector.broadcast %98 : f32 to vector<1x8x128xf32>
      %c0_56 = arith.constant 0 : index
      %c0_57 = arith.constant 0 : index
      %c0_58 = arith.constant 0 : index
      %106 = vector.load %arg6[%c0_56, %c0_57, %c0_58] : memref<1x8x128xf32, #tpu.memory_space<vmem>>, vector<1x8x128xf32>
      tpu.vector_store %arg6[%c0_56, %c0_57, %c0_58], %105 {strides = array<i32>} : memref<1x8x128xf32, #tpu.memory_space<vmem>>, vector<1x8x128xf32>,
      %107 = vector.broadcast %104 : f32 to vector<1x8x128xf32>
      %c0_59 = arith.constant 0 : index
      %c0_60 = arith.constant 0 : index
      %c0_61 = arith.constant 0 : index
      %108 = vector.load %arg7[%c0_59, %c0_60, %c0_61] : memref<1x8x128xf32, #tpu.memory_space<vmem>>, vector<1x8x128xf32>
      tpu.vector_store %arg7[%c0_59, %c0_60, %c0_61], %107 {strides = array<i32>} : memref<1x8x128xf32, #tpu.memory_space<vmem>>, vector<1x8x128xf32>,
    } else {
    }
    return
  }
  func.func @transform_0(%arg0: i32, %arg1: i32) -> (i32, i32) {
    %c0_i32 = arith.constant 0 : i32
    %c0_i32_0 = arith.constant 0 : i32
    %c0_i32_1 = arith.constant 0 : i32
    return %c0_i32, %c0_i32_0 : i32, i32
  }
  func.func @transform_1(%arg0: i32, %arg1: i32) -> (i32, i32) {
    %c0_i32 = arith.constant 0 : i32
    %c0_i32_0 = arith.constant 0 : i32
    %c0_i32_1 = arith.constant 0 : i32
    return %c0_i32, %c0_i32_0 : i32, i32
  }
  func.func @transform_2(%arg0: i32, %arg1: i32) -> (i32, i32) {
    %c2_i32 = arith.constant 2 : i32
    %0 = arith.muli %arg0, %c2_i32 : i32
    %1 = arith.addi %0, %arg1 : i32
    %c0_i32 = arith.constant 0 : i32
    %c0_i32_0 = arith.constant 0 : i32
    return %1, %c0_i32 : i32, i32
  }
  func.func @transform_3(%arg0: i32, %arg1: i32) -> (i32, i32) {
    %c2_i32 = arith.constant 2 : i32
    %0 = arith.muli %arg0, %c2_i32 : i32
    %1 = arith.addi %0, %arg1 : i32
    %c0_i32 = arith.constant 0 : i32
    %c0_i32_0 = arith.constant 0 : i32
    return %1, %c0_i32 : i32, i32
  }
  func.func @transform_4(%arg0: i32, %arg1: i32) -> (i32, i32, i32) {
    %c0_i32 = arith.constant 0 : i32
    %c0_i32_0 = arith.constant 0 : i32
    %c0_i32_1 = arith.constant 0 : i32
    return %arg0, %c0_i32, %c0_i32_0 : i32, i32, i32
  }
  func.func @transform_5(%arg0: i32, %arg1: i32) -> (i32, i32, i32) {
    %c0_i32 = arith.constant 0 : i32
    %c0_i32_0 = arith.constant 0 : i32
    %c0_i32_1 = arith.constant 0 : i32
    return %arg0, %c0_i32, %c0_i32_0 : i32, i32, i32
  }
}

</mosaic_0001>

<llo_original>
// kernel: _generator_loss.1
$region0: #{_generator_loss.1}
  #allocation0 [shape = 'u32[]', space=smem, size = 0x4, offset = 0x4, fixed_abs, tag = 'smem constant byte address 0x4 - core index']
  #allocation1 [shape = 'u32[144,128]{1,0:T(1,128)}', space=vmem, size = 0x12000, scoped, tag = 'internal scratch']
  #allocation2 [shape = 'f32[1,768]{1,0:T(1,128)}', space=vmem, size = 0xc00, scoped, tag = 'scratch operand']
  #allocation3 [shape = 'f32[1,100]{1,0:T(1,128)}', space=vmem, size = 0x200, scoped, tag = 'scratch operand']
  %s0 = inlined_call_operand.vmem [shape: f32[256,160], index: 0, kind: input, shape index: {}]
  %s1 = inlined_call_operand.vmem [shape: f32[160,100], index: 1, kind: input, shape index: {}]
  %s2 = inlined_call_operand.vmem [shape: f32[32,768], index: 2, kind: input, shape index: {}]
  %s3 = inlined_call_operand.vmem [shape: f32[32,768], index: 3, kind: input, shape index: {}]
  %s4 = inlined_call_operand.vmem [shape: f32[2,8,128], index: 4, kind: output, shape index: {0}]
  %s5 = inlined_call_operand.vmem [shape: f32[2,8,128], index: 5, kind: output, shape index: {1}]
  %6 = xla_tuple %s4, %s5
  %s7 = sld [smem:[#allocation0]]
  $region65: #{_generator_loss.1} parent=0
    _
  %s9 = ssub.s32 1, %s7
  %s10 = scalar_select 0, %s9, %s7
  loop: start=0, step=1, limit=6
  $region2: #{_generator_loss.1} parent=0 // loop_pre_header
    _
  $region3: #{_generator_loss.1} parent=0 // loop_header
    %s12 = sphi 0, %s16
    %p13 = scmp.ge.s32.totalorder %s12, 6
    %s19 = sphi 0, %s31
    %s20 = sphi 0, %s27
    %s21 = sphi 0, %s19
    %s22 = sphi 0, %s20
    %s23 = sphi 0, %s21
    %s24 = sphi 0, %s22
    %s32 = sphi 0, %s32
    %s34 = sphi 0, %s32
    %s35 = sphi 0, %s34
    %s49 = sphi 0, %s35
    %s53 = sphi 0, %s53
    %s55 = sphi 0, %s53
    %s56 = sphi 0, %s55
    %s70 = sphi 0, %s56
    %s80 = sphi 0, %s82
    %s83 = sphi 0, %s80
    %s84 = sphi 0, %s83
    %s100 = sphi 0, %s84
    %s110 = sphi 0, %s112
    %s113 = sphi 0, %s110
    %s114 = sphi 0, %s113
    %s130 = sphi 0, %s114
    %s136 = sphi 0, %s138
    %s139 = sphi 0, %s136
    %s140 = sphi 0, %s139
    %s156 = sphi 0, %s140
    %s162 = sphi 0, %s164
    %s165 = sphi 0, %s162
    %s166 = sphi 0, %s165
    %s182 = sphi 0, %s166
  $region4: #{_generator_loss.1} parent=0 // loop_header_branch
    %15 = sbr.rel (%p13) target = $region8
  $region5: #{_generator_loss.1} parent=0 // loop_body
    %s17 = ssub.s32 %s12, 1
    %s18 = ssub.s32 %s12, 2
    %s25 = sadd.s32 1, %s20
    %p26 = scmp.ge.s32.totalorder %s25, 2
    %s27 = scalar_select %p26, 0, %s25
    %s28 = sadd.s32 1, %s19
    %s29 = scalar_select %p26, %s28, %s19
    %p30 = scmp.ge.s32.totalorder %s29, 2
    %s31 = scalar_select %p30, 0, %s29
    %s33 = sadd.s32 %s32, 1
    %p36 = scmp.eq.s32.totalorder %s12, 3
    %p37 = scmp.ne.s32.totalorder %s32, %s34
    %p38 = scmp.eq.s32.totalorder %s12, 0
    %p39 = por %p37, %p38
    %p40 = scmp.ne.s32.totalorder %s32, %s34
    %p41 = scmp.eq.s32.totalorder %s17, 3
    %p42 = por %p40, %p41
    %p43 = scmp.ne.s32.totalorder %s34, %s35
    %p44 = scmp.eq.s32.totalorder %s17, 0
    %p45 = por %p43, %p44
    %p46 = scmp.ne.s32.totalorder %s34, %s35
    %p47 = scmp.eq.s32.totalorder %s18, 3
    %p48 = por %p46, %p47
    %p50 = scmp.ne.s32.totalorder %s35, %s49
    %p51 = scmp.eq.s32.totalorder %s18, 0
    %p52 = por %p50, %p51
    %s54 = sadd.s32 %s53, 1
    %p57 = scmp.eq.s32.totalorder %s12, 3
    %p58 = scmp.ne.s32.totalorder %s53, %s55
    %p59 = scmp.eq.s32.totalorder %s12, 0
    %p60 = por %p58, %p59
    %p61 = scmp.ne.s32.totalorder %s53, %s55
    %p62 = scmp.eq.s32.totalorder %s17, 3
    %p63 = por %p61, %p62
    %p64 = scmp.ne.s32.totalorder %s55, %s56
    %p65 = scmp.eq.s32.totalorder %s17, 0
    %p66 = por %p64, %p65
    %p67 = scmp.ne.s32.totalorder %s55, %s56
    %p68 = scmp.eq.s32.totalorder %s18, 3
    %p69 = por %p67, %p68
    %p71 = scmp.ne.s32.totalorder %s56, %s70
    %p72 = scmp.eq.s32.totalorder %s18, 0
    %p73 = por %p71, %p72
    %s74 = smul.u32 %s19, 2
    %s75 = sadd.s32 %s74, %s20
    %s76 = smul.u32 %s31, 2
    %s77 = sadd.s32 %s76, %s27
    %s78 = ssub.s32 %s75, %s77
    %p79 = scmp.eq.s32.totalorder %s78, 0
    %s81 = sadd.s32 %s80, 1
    %s82 = scalar_select %p79, %s80, %s81
    %p85 = pneg %p79
    %p86 = scmp.eq.s32.totalorder %s12, 3
    %p87 = por %p85, %p86
    %p88 = scmp.ne.s32.totalorder %s80, %s83
    %p89 = scmp.eq.s32.totalorder %s12, 0
    %p90 = por %p88, %p89
    %p91 = scmp.ne.s32.totalorder %s80, %s83
    %p92 = scmp.eq.s32.totalorder %s17, 3
    %p93 = por %p91, %p92
    %p94 = scmp.ne.s32.totalorder %s83, %s84
    %p95 = scmp.eq.s32.totalorder %s17, 0
    %p96 = por %p94, %p95
    %p97 = scmp.ne.s32.totalorder %s83, %s84
    %p98 = scmp.eq.s32.totalorder %s18, 3
    %p99 = por %p97, %p98
    %p101 = scmp.ne.s32.totalorder %s84, %s100
    %p102 = scmp.eq.s32.totalorder %s18, 0
    %p103 = por %p101, %p102
    %s104 = smul.u32 %s19, 2
    %s105 = sadd.s32 %s104, %s20
    %s106 = smul.u32 %s31, 2
    %s107 = sadd.s32 %s106, %s27
    %s108 = ssub.s32 %s105, %s107
    %p109 = scmp.eq.s32.totalorder %s108, 0
    %s111 = sadd.s32 %s110, 1
    %s112 = scalar_select %p109, %s110, %s111
    %p115 = pneg %p109
    %p116 = scmp.eq.s32.totalorder %s12, 3
    %p117 = por %p115, %p116
    %p118 = scmp.ne.s32.totalorder %s110, %s113
    %p119 = scmp.eq.s32.totalorder %s12, 0
    %p120 = por %p118, %p119
    %p121 = scmp.ne.s32.totalorder %s110, %s113
    %p122 = scmp.eq.s32.totalorder %s17, 3
    %p123 = por %p121, %p122
    %p124 = scmp.ne.s32.totalorder %s113, %s114
    %p125 = scmp.eq.s32.totalorder %s17, 0
    %p126 = por %p124, %p125
    %p127 = scmp.ne.s32.totalorder %s113, %s114
    %p128 = scmp.eq.s32.totalorder %s18, 3
    %p129 = por %p127, %p128
    %p131 = scmp.ne.s32.totalorder %s114, %s130
    %p132 = scmp.eq.s32.totalorder %s18, 0
    %p133 = por %p131, %p132
    %s134 = ssub.s32 %s19, %s31
    %p135 = scmp.eq.s32.totalorder %s134, 0
    %s137 = sadd.s32 %s136, 1
    %s138 = scalar_select %p135, %s136, %s137
    %p141 = pneg %p135
    %p142 = scmp.eq.s32.totalorder %s12, 3
    %p143 = por %p141, %p142
    %p144 = scmp.ne.s32.totalorder %s136, %s139
    %p145 = scmp.eq.s32.totalorder %s12, 0
    %p146 = por %p144, %p145
    %p147 = scmp.ne.s32.totalorder %s136, %s139
    %p148 = scmp.eq.s32.totalorder %s17, 3
    %p149 = por %p147, %p148
    %p150 = scmp.ne.s32.totalorder %s139, %s140
    %p151 = scmp.eq.s32.totalorder %s17, 0
    %p152 = por %p150, %p151
    %p153 = scmp.ne.s32.totalorder %s139, %s140
    %p154 = scmp.eq.s32.totalorder %s18, 3
    %p155 = por %p153, %p154
    %p157 = scmp.ne.s32.totalorder %s140, %s156
    %p158 = scmp.eq.s32.totalorder %s18, 0
    %p159 = por %p157, %p158
    %s160 = ssub.s32 %s19, %s31
    %p161 = scmp.eq.s32.totalorder %s160, 0
    %s163 = sadd.s32 %s162, 1
    %s164 = scalar_select %p161, %s162, %s163
    %p167 = pneg %p161
    %p168 = scmp.eq.s32.totalorder %s12, 3
    %p169 = por %p167, %p168
    %p170 = scmp.ne.s32.totalorder %s162, %s165
    %p171 = scmp.eq.s32.totalorder %s12, 0
    %p172 = por %p170, %p171
    %p173 = scmp.ne.s32.totalorder %s162, %s165
    %p174 = scmp.eq.s32.totalorder %s17, 3
    %p175 = por %p173, %p174
    %p176 = scmp.ne.s32.totalorder %s165, %s166
    %p177 = scmp.eq.s32.totalorder %s17, 0
    %p178 = por %p176, %p177
    %p179 = scmp.ne.s32.totalorder %s165, %s166
    %p180 = scmp.eq.s32.totalorder %s18, 3
    %p181 = por %p179, %p180
    %p183 = scmp.ne.s32.totalorder %s166, %s182
    %p184 = scmp.eq.s32.totalorder %s18, 0
    %p185 = por %p183, %p184
    %p186 = scmp.le.s32.totalorder 1, %s12
    %p187 = scmp.lt.s32.totalorder %s12, 5
    %p188 = pnand %p186, %p187
    %p189 = pneg %p188
    // Predicated region
    $region9: #{_generator_loss.1} parent=5 // pred_check
      _
    $region10: #{_generator_loss.1} parent=5 // pred_check_branch
      %191 = sbr.rel (%p188) target = $region12
    $region11: #{_generator_loss.1} parent=5 // pred_region
      %s192 = ssub.s32 %s12, 1
      // Predicated region
      $region13: #{_generator_loss.1} parent=11 // pred_check
        %p193 = pneg %p45
      $region14: #{_generator_loss.1} parent=11 // pred_check_branch
        %195 = sbr.rel (%p193) target = $region16
      $region15: #{_generator_loss.1} parent=11 // pred_region
        _
      $region16: #{_generator_loss.1} parent=11 // pred_fallthru
        _
      // Predicated region
      $region17: #{_generator_loss.1} parent=11 // pred_check
        %p196 = pneg %p66
      $region18: #{_generator_loss.1} parent=11 // pred_check_branch
        %198 = sbr.rel (%p196) target = $region20
      $region19: #{_generator_loss.1} parent=11 // pred_region
        _
      $region20: #{_generator_loss.1} parent=11 // pred_fallthru
        _
    $region12: #{_generator_loss.1} parent=5 // pred_fallthru
      _
    %p199 = scmp.lt.s32.totalorder %s12, 4
    // Predicated region
    $region21: #{_generator_loss.1} parent=5 // pred_check
      %p200 = pneg %p199
    $region22: #{_generator_loss.1} parent=5 // pred_check_branch
      %202 = sbr.rel (%p200) target = $region24
    $region23: #{_generator_loss.1} parent=5 // pred_region
      // Predicated region
      $region25: #{_generator_loss.1} parent=23 // pred_check
        %p203 = pneg %p90
      $region26: #{_generator_loss.1} parent=23 // pred_check_branch
        %205 = sbr.rel (%p203) target = $region28
      $region27: #{_generator_loss.1} parent=23 // pred_region
        %s206 = smul.u32 %s19, 2
        %s207 = sadd.s32 %s206, %s20
        %p208 = scmp.lt.s32.totalorder %s207, 3
        %s209 = scalar_select %p208, %s207, 3
        %s210 = smul.addr %s209, 6
        %s211 = smul.addr %s210, 8
        %s212 = scalar_lea.vmem %s2, %s211
        %s213 = smul.u32 %s19, 2
        %s214 = sadd.s32 %s213, %s20
      $region28: #{_generator_loss.1} parent=23 // pred_fallthru
        _
      // Predicated region
      $region29: #{_generator_loss.1} parent=23 // pred_check
        %p215 = pneg %p120
      $region30: #{_generator_loss.1} parent=23 // pred_check_branch
        %217 = sbr.rel (%p215) target = $region32
      $region31: #{_generator_loss.1} parent=23 // pred_region
        %s218 = smul.u32 %s19, 2
        %s219 = sadd.s32 %s218, %s20
        %p220 = scmp.lt.s32.totalorder %s219, 3
        %s221 = scalar_select %p220, %s219, 3
        %s222 = smul.addr %s221, 6
        %s223 = smul.addr %s222, 8
        %s224 = scalar_lea.vmem %s3, %s223
        %s225 = smul.u32 %s19, 2
        %s226 = sadd.s32 %s225, %s20
      $region32: #{_generator_loss.1} parent=23 // pred_fallthru
        _
    $region24: #{_generator_loss.1} parent=5 // pred_fallthru
      _
    %p227 = scmp.le.s32.totalorder 1, %s12
    %p228 = scmp.lt.s32.totalorder %s12, 5
    %p229 = pnand %p227, %p228
    %p230 = pneg %p229
    // Predicated region
    $region33: #{_generator_loss.1} parent=5 // pred_check
      _
    $region34: #{_generator_loss.1} parent=5 // pred_check_branch
      %232 = sbr.rel (%p229) target = $region36
    $region35: #{_generator_loss.1} parent=5 // pred_region
      %s233 = ssub.s32 %s12, 1
      %p234 = pneg %p45
      %p235 = pneg %p42
      %p236 = pneg %p66
      %p237 = pneg %p63
      %s238 = smul.u32 %s21, 2
      %s239 = sadd.s32 %s238, %s22
      %p240 = scmp.lt.s32.totalorder %s239, 3
      %s241 = scalar_select %p240, %s239, 3
      %s242 = smul.addr %s241, 6
      %s243 = smul.addr %s242, 8
      %s244 = scalar_lea.vmem %s2, %s243
      %p245 = pneg %p96
      %p246 = pneg %p93
      %s247 = smul.u32 %s21, 2
      %s248 = sadd.s32 %s247, %s22
      %p249 = scmp.lt.s32.totalorder %s248, 3
      %s250 = scalar_select %p249, %s248, 3
      %s251 = smul.addr %s250, 6
      %s252 = smul.addr %s251, 8
      %s253 = scalar_lea.vmem %s3, %s252
      %p254 = pneg %p126
      %p255 = pneg %p123
      %p256 = pneg %p152
      %p257 = pneg %p149
      %p258 = scmp.lt.s32.totalorder %s21, 1
      %s259 = scalar_select %p258, %s21, 1
      %s260 = smul.addr %s259, 8
      %s261 = scalar_lea.vmem %s4, %s260
      %p262 = pneg %p178
      %p263 = pneg %p175
      %p264 = scmp.lt.s32.totalorder %s21, 1
      %s265 = scalar_select %p264, %s21, 1
      %s266 = smul.addr %s265, 8
      %s267 = scalar_lea.vmem %s5, %s266
      %s268 = smul.u32 %s21, 2
      %s269 = sadd.s32 %s268, %s22
      %p270 = scmp.lt.s32.totalorder %s269, 3
      %s271 = scalar_select %p270, %s269, 3
      %s272 = smul.addr %s271, 6
      %s273 = smul.addr %s272, 8
      %s274 = scalar_lea.vmem %s2, %s273
      %s275 = smul.u32 %s21, 2
      %s276 = sadd.s32 %s275, %s22
      %s277 = smul.u32 %s21, 2
      %s278 = sadd.s32 %s277, %s22
      %p279 = scmp.lt.s32.totalorder %s278, 3
      %s280 = scalar_select %p279, %s278, 3
      %s281 = smul.addr %s280, 6
      %s282 = smul.addr %s281, 8
      %s283 = scalar_lea.vmem %s3, %s282
      %s284 = smul.u32 %s21, 2
      %s285 = sadd.s32 %s284, %s22
      %p286 = scmp.lt.s32.totalorder %s21, 1
      %s287 = scalar_select %p286, %s21, 1
      %s288 = smul.addr %s287, 8
      %s289 = scalar_lea.vmem %s4, %s288
      %p290 = scmp.lt.s32.totalorder %s21, 1
      %s291 = scalar_select %p290, %s21, 1
      %s292 = smul.addr %s291, 8
      %s293 = scalar_lea.vmem %s5, %s292
      %p294 = scmp.eq.s32.totalorder %s22, 0
      // Predicated region
      $region37: #{_generator_loss.1} parent=35 // pred_check
        %p295 = pneg %p294
      $region38: #{_generator_loss.1} parent=35 // pred_check_branch
        %297 = sbr.rel (%p295) target = $region40
      $region39: #{_generator_loss.1} parent=35 // pred_region
        %v298 = vlaneseq
        %vm299 = vcmp.ge.s32.totalorder %v298, 0
        %vm300 = vcmp.lt.s32.totalorder %v298, 768
        %vm301 = vmand %vm299, %vm300
        %302 = vst.msk [vmem:[#allocation2] sm:$0x3f] %vm301, 0.0
        %vm303 = vcmask 811008
        %304 = vst.msk [vmem:[#allocation3] sm:$0x1] %vm303, 0.0
      $region40: #{_generator_loss.1} parent=35 // pred_fallthru
        _
      %v305 = vld [vmem:[%s274] sm:$0xff]
      %v306 = vld [vmem:[%s274 + $0x8] sm:$0xff]
      %v307 = vld [vmem:[%s274 + $0x10] sm:$0xff]
      %v308 = vld [vmem:[%s274 + $0x18] sm:$0xff]
      %v309 = vld [vmem:[%s274 + $0x20] sm:$0xff]
      %v310 = vld [vmem:[%s274 + $0x28] sm:$0xff]
      %v311 = vld [vmem:[%s283] sm:$0xff]
      %v312 = vld [vmem:[%s283 + $0x8] sm:$0xff]
      %v313 = vld [vmem:[%s283 + $0x10] sm:$0xff]
      %v314 = vld [vmem:[%s283 + $0x18] sm:$0xff]
      %v315 = vld [vmem:[%s283 + $0x20] sm:$0xff]
      %v316 = vld [vmem:[%s283 + $0x28] sm:$0xff]
      %v317 = vsub.f32 %v305, %v311
      %v318 = vsub.f32 %v306, %v312
      %v319 = vsub.f32 %v307, %v313
      %v320 = vsub.f32 %v308, %v314
      %v321 = vsub.f32 %v309, %v315
      %v322 = vsub.f32 %v310, %v316
      %v323 = vand.u32 2147483647, %v317
      %v324 = vand.u32 2147483647, %v318
      %v325 = vand.u32 2147483647, %v319
      %v326 = vand.u32 2147483647, %v320
      %v327 = vand.u32 2147483647, %v321
      %v328 = vand.u32 2147483647, %v322
      %v329 = vmul.f32 %v317, %v317
      %v330 = vmul.f32 %v318, %v318
      %v331 = vmul.f32 %v319, %v319
      %v332 = vmul.f32 %v320, %v320
      %v333 = vmul.f32 %v321, %v321
      %v334 = vmul.f32 %v322, %v322
      %v335 = vadd.f32 %v323, %v329
      %v336 = vadd.f32 %v324, %v330
      %v337 = vadd.f32 %v325, %v331
      %v338 = vadd.f32 %v326, %v332
      %v339 = vadd.f32 %v327, %v333
      %v340 = vadd.f32 %v328, %v334
      %v341 = vld [vmem:[#allocation2] sm:$0x3f]
      %v342 = vrot.slane %v335, 4
      %v343 = vadd.f32 %v335, %v342
      %v344 = vrot.slane %v343, 2
      %v345 = vadd.f32 %v343, %v344
      %v346 = vrot.slane %v345, 1
      %v347 = vadd.f32 %v345, %v346
      %v348 = vrot.slane %v336, 4
      %v349 = vadd.f32 %v336, %v348
      %v350 = vrot.slane %v349, 2
      %v351 = vadd.f32 %v349, %v350
      %v352 = vrot.slane %v351, 1
      %v353 = vadd.f32 %v351, %v352
      %v354 = vrot.slane %v337, 4
      %v355 = vadd.f32 %v337, %v354
      %v356 = vrot.slane %v355, 2
      %v357 = vadd.f32 %v355, %v356
      %v358 = vrot.slane %v357, 1
      %v359 = vadd.f32 %v357, %v358
      %v360 = vrot.slane %v338, 4
      %v361 = vadd.f32 %v338, %v360
      %v362 = vrot.slane %v361, 2
      %v363 = vadd.f32 %v361, %v362
      %v364 = vrot.slane %v363, 1
      %v365 = vadd.f32 %v363, %v364
      %v366 = vrot.slane %v339, 4
      %v367 = vadd.f32 %v339, %v366
      %v368 = vrot.slane %v367, 2
      %v369 = vadd.f32 %v367, %v368
      %v370 = vrot.slane %v369, 1
      %v371 = vadd.f32 %v369, %v370
      %v372 = vrot.slane %v340, 4
      %v373 = vadd.f32 %v340, %v372
      %v374 = vrot.slane %v373, 2
      %v375 = vadd.f32 %v373, %v374
      %v376 = vrot.slane %v375, 1
      %v377 = vadd.f32 %v375, %v376
      %v384 = vcombine.low %v347, %v353
      %v385 = vcombine.low %v359, %v365
      %v386 = vcombine.low %v371, %v377
      %v388 = vunpack.c.l.s4 1966171168
      %v389 = vunpack.c.0.s8 %v388
      %v390 = vlaneseq
      %v391 = vshrl.u32 %v390, 7
      %v392 = vsub.s32 %v389, %v391
      %v393 = vrot.slane %v384, %v392
      %v395 = vunpack.c.l.s4 1966171168
      %v396 = vunpack.c.0.s8 %v395
      %v397 = vlaneseq
      %v398 = vshrl.u32 %v397, 7
      %v399 = vsub.s32 %v396, %v398
      %v400 = vrot.slane %v385, %v399
      %v402 = vunpack.c.l.s4 1966171168
      %v403 = vunpack.c.0.s8 %v402
      %v404 = vlaneseq
      %v405 = vshrl.u32 %v404, 7
      %v406 = vsub.s32 %v403, %v405
      %v407 = vrot.slane %v386, %v406
      %v408 = vcombine.low %v393, %v400
      %v410 = vunpack.c.l.s4 1966171168
      %v411 = vunpack.c.0.s8 %v410
      %v412 = vlaneseq
      %v413 = vshrl.u32 %v412, 7
      %v414 = vsub.s32 %v411, %v413
      %v415 = vrot.slane %v408, %v414
      %v417 = vunpack.c.l.s4 1966171168
      %v418 = vunpack.c.0.s8 %v417
      %v419 = vlaneseq
      %v420 = vshrl.u32 %v419, 7
      %v421 = vsub.s32 %v418, %v420
      %v422 = vrot.slane %v407, %v421
      %v423 = vcombine.low %v415, %v422
      %v425 = vadd.f32 %v341, %v423
      %v426 = vlaneseq
      %vm427 = vcmp.ge.s32.totalorder %v426, 0
      %vm428 = vcmp.lt.s32.totalorder %v426, 768
      %vm429 = vmand %vm427, %vm428
      %430 = vst.msk [vmem:[#allocation2] sm:$0x3f] %vm429, %v425
      %v431 = vmul.f32 %v305, 255.0
      %v432 = vmul.f32 %v306, 255.0
      %v433 = vsub.f32 %v431, 127.5
      %v434 = vsub.f32 %v432, 127.5
      %v435 = vmul.f32 %v311, 255.0
      %v436 = vmul.f32 %v312, 255.0
      %v437 = vsub.f32 %v435, 127.5
      %v438 = vsub.f32 %v436, 127.5
      %v439 = vld [vmem:[%s0] sm:$0xff]
      %v440 = vld [vmem:[%s0 + $0x8] sm:$0xff]
      %v441 = vld [vmem:[%s0 + $0x10] sm:$0xff]
      %v442 = vld [vmem:[%s0 + $0x18] sm:$0xff]
      %v443 = vld [vmem:[%s0 + $0x20] sm:$0xff]
      %v444 = vld [vmem:[%s0 + $0x28] sm:$0xff]
      %v445 = vld [vmem:[%s0 + $0x30] sm:$0xff]
      %v446 = vld [vmem:[%s0 + $0x38] sm:$0xff]
      %v447 = vld [vmem:[%s0 + $0x40] sm:$0xff]
      %v448 = vld [vmem:[%s0 + $0x48] sm:$0xff]
      %v449 = vld [vmem:[%s0 + $0x50] sm:$0xff]
      %v450 = vld [vmem:[%s0 + $0x58] sm:$0xff]
      %v451 = vld [vmem:[%s0 + $0x60] sm:$0xff]
      %v452 = vld [vmem:[%s0 + $0x68] sm:$0xff]
      %v453 = vld [vmem:[%s0 + $0x70] sm:$0xff]
      %v454 = vld [vmem:[%s0 + $0x78] sm:$0xff]
      %v455 = vld [vmem:[%s0 + $0x80] sm:$0xff]
      %v456 = vld [vmem:[%s0 + $0x88] sm:$0xff]
      %v457 = vld [vmem:[%s0 + $0x90] sm:$0xff]
      %v458 = vld [vmem:[%s0 + $0x98] sm:$0xff]
      %v459 = vld [vmem:[%s0 + $0xa0] sm:$0xff]
      %v460 = vld [vmem:[%s0 + $0xa8] sm:$0xff]
      %v461 = vld [vmem:[%s0 + $0xb0] sm:$0xff]
      %v462 = vld [vmem:[%s0 + $0xb8] sm:$0xff]
      %v463 = vld [vmem:[%s0 + $0xc0] sm:$0xff]
      %v464 = vld [vmem:[%s0 + $0xc8] sm:$0xff]
      %v465 = vld [vmem:[%s0 + $0xd0] sm:$0xff]
      %v466 = vld [vmem:[%s0 + $0xd8] sm:$0xff]
      %v467 = vld [vmem:[%s0 + $0xe0] sm:$0xff]
      %v468 = vld [vmem:[%s0 + $0xe8] sm:$0xff]
      %v469 = vld [vmem:[%s0 + $0xf0] sm:$0xff]
      %v470 = vld [vmem:[%s0 + $0xf8] sm:$0xff]
      %v471 = vld [vmem:[%s0 + $0x100] sm:$0xff]
      %v472 = vld [vmem:[%s0 + $0x108] sm:$0xff]
      %v473 = vld [vmem:[%s0 + $0x110] sm:$0xff]
      %v474 = vld [vmem:[%s0 + $0x118] sm:$0xff]
      %v475 = vld [vmem:[%s0 + $0x120] sm:$0xff]
      %v476 = vld [vmem:[%s0 + $0x128] sm:$0xff]
      %v477 = vld [vmem:[%s0 + $0x130] sm:$0xff]
      %v478 = vld [vmem:[%s0 + $0x138] sm:$0xff]
      %v479 = vld [vmem:[%s0 + $0x140] sm:$0xff]
      %v480 = vld [vmem:[%s0 + $0x148] sm:$0xff]
      %v481 = vld [vmem:[%s0 + $0x150] sm:$0xff]
      %v482 = vld [vmem:[%s0 + $0x158] sm:$0xff]
      %v483 = vld [vmem:[%s0 + $0x160] sm:$0xff]
      %v484 = vld [vmem:[%s0 + $0x168] sm:$0xff]
      %v485 = vld [vmem:[%s0 + $0x170] sm:$0xff]
      %v486 = vld [vmem:[%s0 + $0x178] sm:$0xff]
      %v487 = vld [vmem:[%s0 + $0x180] sm:$0xff]
      %v488 = vld [vmem:[%s0 + $0x188] sm:$0xff]
      %v489 = vld [vmem:[%s0 + $0x190] sm:$0xff]
      %v490 = vld [vmem:[%s0 + $0x198] sm:$0xff]
      %v491 = vld [vmem:[%s0 + $0x1a0] sm:$0xff]
      %v492 = vld [vmem:[%s0 + $0x1a8] sm:$0xff]
      %v493 = vld [vmem:[%s0 + $0x1b0] sm:$0xff]
      %v494 = vld [vmem:[%s0 + $0x1b8] sm:$0xff]
      %v495 = vld [vmem:[%s0 + $0x1c0] sm:$0xff]
      %v496 = vld [vmem:[%s0 + $0x1c8] sm:$0xff]
      %v497 = vld [vmem:[%s0 + $0x1d0] sm:$0xff]
      %v498 = vld [vmem:[%s0 + $0x1d8] sm:$0xff]
      %v499 = vld [vmem:[%s0 + $0x1e0] sm:$0xff]
      %v500 = vld [vmem:[%s0 + $0x1e8] sm:$0xff]
      %v501 = vld [vmem:[%s0 + $0x1f0] sm:$0xff]
      %v502 = vld [vmem:[%s0 + $0x1f8] sm:$0xff]
      %v503 = vld [vmem:[%s1] sm:$0xff]
      %v504 = vld [vmem:[%s1 + $0x8] sm:$0xff]
      %v505 = vld [vmem:[%s1 + $0x10] sm:$0xff]
      %v506 = vld [vmem:[%s1 + $0x18] sm:$0xff]
      %v507 = vld [vmem:[%s1 + $0x20] sm:$0xff]
      %v508 = vld [vmem:[%s1 + $0x28] sm:$0xff]
      %v509 = vld [vmem:[%s1 + $0x30] sm:$0xff]
      %v510 = vld [vmem:[%s1 + $0x38] sm:$0xff]
      %v511 = vld [vmem:[%s1 + $0x40] sm:$0xff]
      %v512 = vld [vmem:[%s1 + $0x48] sm:$0xff]
      %v513 = vld [vmem:[%s1 + $0x50] sm:$0xff]
      %v514 = vld [vmem:[%s1 + $0x58] sm:$0xff]
      %v515 = vld [vmem:[%s1 + $0x60] sm:$0xff]
      %v516 = vld [vmem:[%s1 + $0x68] sm:$0xff]
      %v517 = vld [vmem:[%s1 + $0x70] sm:$0xff]
      %v518 = vld [vmem:[%s1 + $0x78] sm:$0xff]
      %v519 = vld [vmem:[%s1 + $0x80] sm:$0xff]
      %v520 = vld [vmem:[%s1 + $0x88] sm:$0xff]
      %v521 = vld [vmem:[%s1 + $0x90] sm:$0xff]
      %v522 = vld [vmem:[%s1 + $0x98] sm:$0xff]
      %523 = vmatprep.subr.mxu0 %v470
      %524 = vmatpush1.msra.mxu0 %v469
      %525 = vmatprep.subr.mxu0 %v468
      %526 = vmatpush1.msra.mxu0 %v467
      %527 = vmatprep.subr.mxu0 %v466
      %528 = vmatpush1.msra.mxu0 %v465
      %529 = vmatprep.subr.mxu0 %v464
      %530 = vmatpush1.msra.mxu0 %v463
      %531 = vmatprep.subr.mxu0 %v462
      %532 = vmatpush1.msra.mxu0 %v461
      %533 = vmatprep.subr.mxu0 %v460
      %534 = vmatpush1.msra.mxu0 %v459
      %535 = vmatprep.subr.mxu0 %v458
      %536 = vmatpush1.msra.mxu0 %v457
      %537 = vmatprep.subr.mxu0 %v456
      %538 = vmatpush1.msra.mxu0 %v455
      %539 = vmatprep.subr.mxu0 %v454
      %540 = vmatpush1.msra.mxu0 %v453
      %541 = vmatprep.subr.mxu0 %v452
      %542 = vmatpush1.msra.mxu0 %v451
      %543 = vmatprep.subr.mxu0 %v450
      %544 = vmatpush1.msra.mxu0 %v449
      %545 = vmatprep.subr.mxu0 %v448
      %546 = vmatpush1.msra.mxu0 %v447
      %547 = vmatprep.subr.mxu0 %v446
      %548 = vmatpush1.msra.mxu0 %v445
      %549 = vmatprep.subr.mxu0 %v444
      %550 = vmatpush1.msra.mxu0 %v443
      %551 = vmatprep.subr.mxu0 %v442
      %552 = vmatpush1.msra.mxu0 %v441
      %553 = vmatprep.subr.mxu0 %v440
      %554 = vmatpush1.msra.mxu0 %v439
      %555 = vmatprep.subr.mxu0 %v502
      %556 = vmatpush2.msra.mxu0 %v501
      %557 = vmatprep.subr.mxu0 %v500
      %558 = vmatpush2.msra.mxu0 %v499
      %559 = vmatprep.subr.mxu0 %v498
      %560 = vmatpush2.msra.mxu0 %v497
      %561 = vmatprep.subr.mxu0 %v496
      %562 = vmatpush2.msra.mxu0 %v495
      %563 = vmatprep.subr.mxu0 %v494
      %564 = vmatpush2.msra.mxu0 %v493
      %565 = vmatprep.subr.mxu0 %v492
      %566 = vmatpush2.msra.mxu0 %v491
      %567 = vmatprep.subr.mxu0 %v490
      %568 = vmatpush2.msra.mxu0 %v489
      %569 = vmatprep.subr.mxu0 %v488
      %570 = vmatpush2.msra.mxu0 %v487
      %571 = vmatprep.subr.mxu0 %v486
      %572 = vmatpush2.msra.mxu0 %v485
      %573 = vmatprep.subr.mxu0 %v484
      %574 = vmatpush2.msra.mxu0 %v483
      %575 = vmatprep.subr.mxu0 %v482
      %576 = vmatpush2.msra.mxu0 %v481
      %577 = vmatprep.subr.mxu0 %v480
      %578 = vmatpush2.msra.mxu0 %v479
      %579 = vmatprep.subr.mxu0 %v478
      %580 = vmatpush2.msra.mxu0 %v477
      %581 = vmatprep.subr.mxu0 %v476
      %582 = vmatpush2.msra.mxu0 %v475
      %583 = vmatprep.subr.mxu0 %v474
      %584 = vmatpush2.msra.mxu0 %v473
      %585 = vmatprep.subr.mxu0 %v472
      %586 = vmatpush2.msra.mxu0 %v471
      %587 = vmatprep.mubr.f32.mxu0 %v434
      %588 = vmatmul.mubr.f32.gmra.mxu0 %v433
      %v589 = vpop.f32.mrf.mxu0
      %v590 = vadd.f32 0.0, %v589
      %v591 = vpop.f32.mrf.mxu0
      %v592 = vadd.f32 0.0, %v591
      %593 = vdwg.mxu0
      %vm594 = vcmask 261120
      %v596 = vsel %vm594, %v592, 0
      %598 = vmatprep.subr.mxu0 0.0
      %599 = vmatpush1.msra.mxu0 %v518
      %600 = vmatprep.subr.mxu0 0.0
      %601 = vmatpush1.msra.mxu0 %v517
      %602 = vmatprep.subr.mxu0 0.0
      %603 = vmatpush1.msra.mxu0 %v516
      %604 = vmatprep.subr.mxu0 0.0
      %605 = vmatpush1.msra.mxu0 %v515
      %606 = vmatprep.subr.mxu0 0.0
      %607 = vmatpush1.msra.mxu0 %v514
      %608 = vmatprep.subr.mxu0 0.0
      %609 = vmatpush1.msra.mxu0 %v513
      %610 = vmatprep.subr.mxu0 0.0
      %611 = vmatpush1.msra.mxu0 %v512
      %612 = vmatprep.subr.mxu0 0.0
      %613 = vmatpush1.msra.mxu0 %v511
      %614 = vmatprep.subr.mxu0 0.0
      %615 = vmatpush1.msra.mxu0 %v510
      %616 = vmatprep.subr.mxu0 0.0
      %617 = vmatpush1.msra.mxu0 %v509
      %618 = vmatprep.subr.mxu0 0.0
      %619 = vmatpush1.msra.mxu0 %v508
      %620 = vmatprep.subr.mxu0 0.0
      %621 = vmatpush1.msra.mxu0 %v507
      %622 = vmatprep.subr.mxu0 0.0
      %623 = vmatpush1.msra.mxu0 %v506
      %624 = vmatprep.subr.mxu0 0.0
      %625 = vmatpush1.msra.mxu0 %v505
      %626 = vmatprep.subr.mxu0 0.0
      %627 = vmatpush1.msra.mxu0 %v504
      %628 = vmatprep.subr.mxu0 0.0
      %629 = vmatpush1.msra.mxu0 %v503
      %630 = vmatprep.subr.mxu0 0.0
      %631 = vmatpush2.msra.mxu0 0.0
      %632 = vmatprep.subr.mxu0 0.0
      %633 = vmatpush2.msra.mxu0 0.0
      %634 = vmatprep.subr.mxu0 0.0
      %635 = vmatpush2.msra.mxu0 0.0
      %636 = vmatprep.subr.mxu0 0.0
      %637 = vmatpush2.msra.mxu0 0.0
      %638 = vmatprep.subr.mxu0 0.0
      %639 = vmatpush2.msra.mxu0 0.0
      %640 = vmatprep.subr.mxu0 0.0
      %641 = vmatpush2.msra.mxu0 0.0
      %642 = vmatprep.subr.mxu0 0.0
      %643 = vmatpush2.msra.mxu0 0.0
      %644 = vmatprep.subr.mxu0 0.0
      %645 = vmatpush2.msra.mxu0 0.0
      %646 = vmatprep.subr.mxu0 0.0
      %647 = vmatpush2.msra.mxu0 0.0
      %648 = vmatprep.subr.mxu0 0.0
      %649 = vmatpush2.msra.mxu0 0.0
      %650 = vmatprep.subr.mxu0 0.0
      %651 = vmatpush2.msra.mxu0 0.0
      %652 = vmatprep.subr.mxu0 0.0
      %653 = vmatpush2.msra.mxu0 0.0
      %654 = vmatprep.subr.mxu0 0.0
      %655 = vmatpush2.msra.mxu0 %v522
      %656 = vmatprep.subr.mxu0 0.0
      %657 = vmatpush2.msra.mxu0 %v521
      %658 = vmatprep.subr.mxu0 0.0
      %659 = vmatpush2.msra.mxu0 %v520
      %660 = vmatprep.subr.mxu0 0.0
      %661 = vmatpush2.msra.mxu0 %v519
      %662 = vmatprep.mubr.f32.mxu0 %v596
      %663 = vmatmul.mubr.f32.gmra.mxu0 %v590
      %v664 = vpop.f32.mrf.mxu0
      %v665 = vadd.f32 0.0, %v664
      %v666 = vpop.f32.mrf.mxu0
      %667 = vdwg.mxu0
      %v668 = vmul.f32 %v665, 0.020408163
      %669 = vmatprep.subr.mxu0 %v470
      %670 = vmatpush1.msra.mxu0 %v469
      %671 = vmatprep.subr.mxu0 %v468
      %672 = vmatpush1.msra.mxu0 %v467
      %673 = vmatprep.subr.mxu0 %v466
      %674 = vmatpush1.msra.mxu0 %v465
      %675 = vmatprep.subr.mxu0 %v464
      %676 = vmatpush1.msra.mxu0 %v463
      %677 = vmatprep.subr.mxu0 %v462
      %678 = vmatpush1.msra.mxu0 %v461
      %679 = vmatprep.subr.mxu0 %v460
      %680 = vmatpush1.msra.mxu0 %v459
      %681 = vmatprep.subr.mxu0 %v458
      %682 = vmatpush1.msra.mxu0 %v457
      %683 = vmatprep.subr.mxu0 %v456
      %684 = vmatpush1.msra.mxu0 %v455
      %685 = vmatprep.subr.mxu0 %v454
      %686 = vmatpush1.msra.mxu0 %v453
      %687 = vmatprep.subr.mxu0 %v452
      %688 = vmatpush1.msra.mxu0 %v451
      %689 = vmatprep.subr.mxu0 %v450
      %690 = vmatpush1.msra.mxu0 %v449
      %691 = vmatprep.subr.mxu0 %v448
      %692 = vmatpush1.msra.mxu0 %v447
      %693 = vmatprep.subr.mxu0 %v446
      %694 = vmatpush1.msra.mxu0 %v445
      %695 = vmatprep.subr.mxu0 %v444
      %696 = vmatpush1.msra.mxu0 %v443
      %697 = vmatprep.subr.mxu0 %v442
      %698 = vmatpush1.msra.mxu0 %v441
      %699 = vmatprep.subr.mxu0 %v440
      %700 = vmatpush1.msra.mxu0 %v439
      %701 = vmatprep.subr.mxu0 %v502
      %702 = vmatpush2.msra.mxu0 %v501
      %703 = vmatprep.subr.mxu0 %v500
      %704 = vmatpush2.msra.mxu0 %v499
      %705 = vmatprep.subr.mxu0 %v498
      %706 = vmatpush2.msra.mxu0 %v497
      %707 = vmatprep.subr.mxu0 %v496
      %708 = vmatpush2.msra.mxu0 %v495
      %709 = vmatprep.subr.mxu0 %v494
      %710 = vmatpush2.msra.mxu0 %v493
      %711 = vmatprep.subr.mxu0 %v492
      %712 = vmatpush2.msra.mxu0 %v491
      %713 = vmatprep.subr.mxu0 %v490
      %714 = vmatpush2.msra.mxu0 %v489
      %715 = vmatprep.subr.mxu0 %v488
      %716 = vmatpush2.msra.mxu0 %v487
      %717 = vmatprep.subr.mxu0 %v486
      %718 = vmatpush2.msra.mxu0 %v485
      %719 = vmatprep.subr.mxu0 %v484
      %720 = vmatpush2.msra.mxu0 %v483
      %721 = vmatprep.subr.mxu0 %v482
      %722 = vmatpush2.msra.mxu0 %v481
      %723 = vmatprep.subr.mxu0 %v480
      %724 = vmatpush2.msra.mxu0 %v479
      %725 = vmatprep.subr.mxu0 %v478
      %726 = vmatpush2.msra.mxu0 %v477
      %727 = vmatprep.subr.mxu0 %v476
      %728 = vmatpush2.msra.mxu0 %v475
      %729 = vmatprep.subr.mxu0 %v474
      %730 = vmatpush2.msra.mxu0 %v473
      %731 = vmatprep.subr.mxu0 %v472
      %732 = vmatpush2.msra.mxu0 %v471
      %733 = vmatprep.mubr.f32.mxu0 %v438
      %734 = vmatmul.mubr.f32.gmra.mxu0 %v437
      %v735 = vpop.f32.mrf.mxu0
      %v736 = vadd.f32 0.0, %v735
      %v737 = vpop.f32.mrf.mxu0
      %v738 = vadd.f32 0.0, %v737
      %739 = vdwg.mxu0
      %v741 = vsel %vm594, %v738, 0
      %743 = vmatprep.subr.mxu0 0.0
      %744 = vmatpush1.msra.mxu0 %v518
      %745 = vmatprep.subr.mxu0 0.0
      %746 = vmatpush1.msra.mxu0 %v517
      %747 = vmatprep.subr.mxu0 0.0
      %748 = vmatpush1.msra.mxu0 %v516
      %749 = vmatprep.subr.mxu0 0.0
      %750 = vmatpush1.msra.mxu0 %v515
      %751 = vmatprep.subr.mxu0 0.0
      %752 = vmatpush1.msra.mxu0 %v514
      %753 = vmatprep.subr.mxu0 0.0
      %754 = vmatpush1.msra.mxu0 %v513
      %755 = vmatprep.subr.mxu0 0.0
      %756 = vmatpush1.msra.mxu0 %v512
      %757 = vmatprep.subr.mxu0 0.0
      %758 = vmatpush1.msra.mxu0 %v511
      %759 = vmatprep.subr.mxu0 0.0
      %760 = vmatpush1.msra.mxu0 %v510
      %761 = vmatprep.subr.mxu0 0.0
      %762 = vmatpush1.msra.mxu0 %v509
      %763 = vmatprep.subr.mxu0 0.0
      %764 = vmatpush1.msra.mxu0 %v508
      %765 = vmatprep.subr.mxu0 0.0
      %766 = vmatpush1.msra.mxu0 %v507
      %767 = vmatprep.subr.mxu0 0.0
      %768 = vmatpush1.msra.mxu0 %v506
      %769 = vmatprep.subr.mxu0 0.0
      %770 = vmatpush1.msra.mxu0 %v505
      %771 = vmatprep.subr.mxu0 0.0
      %772 = vmatpush1.msra.mxu0 %v504
      %773 = vmatprep.subr.mxu0 0.0
      %774 = vmatpush1.msra.mxu0 %v503
      %775 = vmatprep.subr.mxu0 0.0
      %776 = vmatpush2.msra.mxu0 0.0
      %777 = vmatprep.subr.mxu0 0.0
      %778 = vmatpush2.msra.mxu0 0.0
      %779 = vmatprep.subr.mxu0 0.0
      %780 = vmatpush2.msra.mxu0 0.0
      %781 = vmatprep.subr.mxu0 0.0
      %782 = vmatpush2.msra.mxu0 0.0
      %783 = vmatprep.subr.mxu0 0.0
      %784 = vmatpush2.msra.mxu0 0.0
      %785 = vmatprep.subr.mxu0 0.0
      %786 = vmatpush2.msra.mxu0 0.0
      %787 = vmatprep.subr.mxu0 0.0
      %788 = vmatpush2.msra.mxu0 0.0
      %789 = vmatprep.subr.mxu0 0.0
      %790 = vmatpush2.msra.mxu0 0.0
      %791 = vmatprep.subr.mxu0 0.0
      %792 = vmatpush2.msra.mxu0 0.0
      %793 = vmatprep.subr.mxu0 0.0
      %794 = vmatpush2.msra.mxu0 0.0
      %795 = vmatprep.subr.mxu0 0.0
      %796 = vmatpush2.msra.mxu0 0.0
      %797 = vmatprep.subr.mxu0 0.0
      %798 = vmatpush2.msra.mxu0 0.0
      %799 = vmatprep.subr.mxu0 0.0
      %800 = vmatpush2.msra.mxu0 %v522
      %801 = vmatprep.subr.mxu0 0.0
      %802 = vmatpush2.msra.mxu0 %v521
      %803 = vmatprep.subr.mxu0 0.0
      %804 = vmatpush2.msra.mxu0 %v520
      %805 = vmatprep.subr.mxu0 0.0
      %806 = vmatpush2.msra.mxu0 %v519
      %807 = vmatprep.mubr.f32.mxu0 %v741
      %808 = vmatmul.mubr.f32.gmra.mxu0 %v736
      %v809 = vpop.f32.mrf.mxu0
      %v810 = vadd.f32 0.0, %v809
      %v811 = vpop.f32.mrf.mxu0
      %812 = vdwg.mxu0
      %v813 = vmul.f32 %v810, 0.020408163
      %v814 = vmul.f32 %v433, %v433
      %v815 = vmul.f32 %v434, %v434
      %816 = vmatprep.subr.mxu0 %v470
      %817 = vmatpush1.msra.mxu0 %v469
      %818 = vmatprep.subr.mxu0 %v468
      %819 = vmatpush1.msra.mxu0 %v467
      %820 = vmatprep.subr.mxu0 %v466
      %821 = vmatpush1.msra.mxu0 %v465
      %822 = vmatprep.subr.mxu0 %v464
      %823 = vmatpush1.msra.mxu0 %v463
      %824 = vmatprep.subr.mxu0 %v462
      %825 = vmatpush1.msra.mxu0 %v461
      %826 = vmatprep.subr.mxu0 %v460
      %827 = vmatpush1.msra.mxu0 %v459
      %828 = vmatprep.subr.mxu0 %v458
      %829 = vmatpush1.msra.mxu0 %v457
      %830 = vmatprep.subr.mxu0 %v456
      %831 = vmatpush1.msra.mxu0 %v455
      %832 = vmatprep.subr.mxu0 %v454
      %833 = vmatpush1.msra.mxu0 %v453
      %834 = vmatprep.subr.mxu0 %v452
      %835 = vmatpush1.msra.mxu0 %v451
      %836 = vmatprep.subr.mxu0 %v450
      %837 = vmatpush1.msra.mxu0 %v449
      %838 = vmatprep.subr.mxu0 %v448
      %839 = vmatpush1.msra.mxu0 %v447
      %840 = vmatprep.subr.mxu0 %v446
      %841 = vmatpush1.msra.mxu0 %v445
      %842 = vmatprep.subr.mxu0 %v444
      %843 = vmatpush1.msra.mxu0 %v443
      %844 = vmatprep.subr.mxu0 %v442
      %845 = vmatpush1.msra.mxu0 %v441
      %846 = vmatprep.subr.mxu0 %v440
      %847 = vmatpush1.msra.mxu0 %v439
      %848 = vmatprep.subr.mxu0 %v502
      %849 = vmatpush2.msra.mxu0 %v501
      %850 = vmatprep.subr.mxu0 %v500
      %851 = vmatpush2.msra.mxu0 %v499
      %852 = vmatprep.subr.mxu0 %v498
      %853 = vmatpush2.msra.mxu0 %v497
      %854 = vmatprep.subr.mxu0 %v496
      %855 = vmatpush2.msra.mxu0 %v495
      %856 = vmatprep.subr.mxu0 %v494
      %857 = vmatpush2.msra.mxu0 %v493
      %858 = vmatprep.subr.mxu0 %v492
      %859 = vmatpush2.msra.mxu0 %v491
      %860 = vmatprep.subr.mxu0 %v490
      %861 = vmatpush2.msra.mxu0 %v489
      %862 = vmatprep.subr.mxu0 %v488
      %863 = vmatpush2.msra.mxu0 %v487
      %864 = vmatprep.subr.mxu0 %v486
      %865 = vmatpush2.msra.mxu0 %v485
      %866 = vmatprep.subr.mxu0 %v484
      %867 = vmatpush2.msra.mxu0 %v483
      %868 = vmatprep.subr.mxu0 %v482
      %869 = vmatpush2.msra.mxu0 %v481
      %870 = vmatprep.subr.mxu0 %v480
      %871 = vmatpush2.msra.mxu0 %v479
      %872 = vmatprep.subr.mxu0 %v478
      %873 = vmatpush2.msra.mxu0 %v477
      %874 = vmatprep.subr.mxu0 %v476
      %875 = vmatpush2.msra.mxu0 %v475
      %876 = vmatprep.subr.mxu0 %v474
      %877 = vmatpush2.msra.mxu0 %v473
      %878 = vmatprep.subr.mxu0 %v472
      %879 = vmatpush2.msra.mxu0 %v471
      %880 = vmatprep.mubr.f32.mxu0 %v815
      %881 = vmatmul.mubr.f32.gmra.mxu0 %v814
      %v882 = vpop.f32.mrf.mxu0
      %v883 = vadd.f32 0.0, %v882
      %v884 = vpop.f32.mrf.mxu0
      %v885 = vadd.f32 0.0, %v884
      %886 = vdwg.mxu0
      %v888 = vsel %vm594, %v885, 0
      %890 = vmatprep.subr.mxu0 0.0
      %891 = vmatpush1.msra.mxu0 %v518
      %892 = vmatprep.subr.mxu0 0.0
      %893 = vmatpush1.msra.mxu0 %v517
      %894 = vmatprep.subr.mxu0 0.0
      %895 = vmatpush1.msra.mxu0 %v516
      %896 = vmatprep.subr.mxu0 0.0
      %897 = vmatpush1.msra.mxu0 %v515
      %898 = vmatprep.subr.mxu0 0.0
      %899 = vmatpush1.msra.mxu0 %v514
      %900 = vmatprep.subr.mxu0 0.0
      %901 = vmatpush1.msra.mxu0 %v513
      %902 = vmatprep.subr.mxu0 0.0
      %903 = vmatpush1.msra.mxu0 %v512
      %904 = vmatprep.subr.mxu0 0.0
      %905 = vmatpush1.msra.mxu0 %v511
      %906 = vmatprep.subr.mxu0 0.0
      %907 = vmatpush1.msra.mxu0 %v510
      %908 = vmatprep.subr.mxu0 0.0
      %909 = vmatpush1.msra.mxu0 %v509
      %910 = vmatprep.subr.mxu0 0.0
      %911 = vmatpush1.msra.mxu0 %v508
      %912 = vmatprep.subr.mxu0 0.0
      %913 = vmatpush1.msra.mxu0 %v507
      %914 = vmatprep.subr.mxu0 0.0
      %915 = vmatpush1.msra.mxu0 %v506
      %916 = vmatprep.subr.mxu0 0.0
      %917 = vmatpush1.msra.mxu0 %v505
      %918 = vmatprep.subr.mxu0 0.0
      %919 = vmatpush1.msra.mxu0 %v504
      %920 = vmatprep.subr.mxu0 0.0
      %921 = vmatpush1.msra.mxu0 %v503
      %922 = vmatprep.subr.mxu0 0.0
      %923 = vmatpush2.msra.mxu0 0.0
      %924 = vmatprep.subr.mxu0 0.0
      %925 = vmatpush2.msra.mxu0 0.0
      %926 = vmatprep.subr.mxu0 0.0
      %927 = vmatpush2.msra.mxu0 0.0
      %928 = vmatprep.subr.mxu0 0.0
      %929 = vmatpush2.msra.mxu0 0.0
      %930 = vmatprep.subr.mxu0 0.0
      %931 = vmatpush2.msra.mxu0 0.0
      %932 = vmatprep.subr.mxu0 0.0
      %933 = vmatpush2.msra.mxu0 0.0
      %934 = vmatprep.subr.mxu0 0.0
      %935 = vmatpush2.msra.mxu0 0.0
      %936 = vmatprep.subr.mxu0 0.0
      %937 = vmatpush2.msra.mxu0 0.0
      %938 = vmatprep.subr.mxu0 0.0
      %939 = vmatpush2.msra.mxu0 0.0
      %940 = vmatprep.subr.mxu0 0.0
      %941 = vmatpush2.msra.mxu0 0.0
      %942 = vmatprep.subr.mxu0 0.0
      %943 = vmatpush2.msra.mxu0 0.0
      %944 = vmatprep.subr.mxu0 0.0
      %945 = vmatpush2.msra.mxu0 0.0
      %946 = vmatprep.subr.mxu0 0.0
      %947 = vmatpush2.msra.mxu0 %v522
      %948 = vmatprep.subr.mxu0 0.0
      %949 = vmatpush2.msra.mxu0 %v521
      %950 = vmatprep.subr.mxu0 0.0
      %951 = vmatpush2.msra.mxu0 %v520
      %952 = vmatprep.subr.mxu0 0.0
      %953 = vmatpush2.msra.mxu0 %v519
      %954 = vmatprep.mubr.f32.mxu0 %v888
      %955 = vmatmul.mubr.f32.gmra.mxu0 %v883
      %v956 = vpop.f32.mrf.mxu0
      %v957 = vadd.f32 0.0, %v956
      %v958 = vpop.f32.mrf.mxu0
      %959 = vdwg.mxu0
      %v960 = vmul.f32 %v957, 0.020408163
      %v961 = vmul.f32 %v437, %v437
      %v962 = vmul.f32 %v438, %v438
      %963 = vmatprep.subr.mxu0 %v470
      %964 = vmatpush1.msra.mxu0 %v469
      %965 = vmatprep.subr.mxu0 %v468
      %966 = vmatpush1.msra.mxu0 %v467
      %967 = vmatprep.subr.mxu0 %v466
      %968 = vmatpush1.msra.mxu0 %v465
      %969 = vmatprep.subr.mxu0 %v464
      %970 = vmatpush1.msra.mxu0 %v463
      %971 = vmatprep.subr.mxu0 %v462
      %972 = vmatpush1.msra.mxu0 %v461
      %973 = vmatprep.subr.mxu0 %v460
      %974 = vmatpush1.msra.mxu0 %v459
      %975 = vmatprep.subr.mxu0 %v458
      %976 = vmatpush1.msra.mxu0 %v457
      %977 = vmatprep.subr.mxu0 %v456
      %978 = vmatpush1.msra.mxu0 %v455
      %979 = vmatprep.subr.mxu0 %v454
      %980 = vmatpush1.msra.mxu0 %v453
      %981 = vmatprep.subr.mxu0 %v452
      %982 = vmatpush1.msra.mxu0 %v451
      %983 = vmatprep.subr.mxu0 %v450
      %984 = vmatpush1.msra.mxu0 %v449
      %985 = vmatprep.subr.mxu0 %v448
      %986 = vmatpush1.msra.mxu0 %v447
      %987 = vmatprep.subr.mxu0 %v446
      %988 = vmatpush1.msra.mxu0 %v445
      %989 = vmatprep.subr.mxu0 %v444
      %990 = vmatpush1.msra.mxu0 %v443
      %991 = vmatprep.subr.mxu0 %v442
      %992 = vmatpush1.msra.mxu0 %v441
      %993 = vmatprep.subr.mxu0 %v440
      %994 = vmatpush1.msra.mxu0 %v439
      %995 = vmatprep.subr.mxu0 %v502
      %996 = vmatpush2.msra.mxu0 %v501
      %997 = vmatprep.subr.mxu0 %v500
      %998 = vmatpush2.msra.mxu0 %v499
      %999 = vmatprep.subr.mxu0 %v498
      %1000 = vmatpush2.msra.mxu0 %v497
      %1001 = vmatprep.subr.mxu0 %v496
      %1002 = vmatpush2.msra.mxu0 %v495
      %1003 = vmatprep.subr.mxu0 %v494
      %1004 = vmatpush2.msra.mxu0 %v493
      %1005 = vmatprep.subr.mxu0 %v492
      %1006 = vmatpush2.msra.mxu0 %v491
      %1007 = vmatprep.subr.mxu0 %v490
      %1008 = vmatpush2.msra.mxu0 %v489
      %1009 = vmatprep.subr.mxu0 %v488
      %1010 = vmatpush2.msra.mxu0 %v487
      %1011 = vmatprep.subr.mxu0 %v486
      %1012 = vmatpush2.msra.mxu0 %v485
      %1013 = vmatprep.subr.mxu0 %v484
      %1014 = vmatpush2.msra.mxu0 %v483
      %1015 = vmatprep.subr.mxu0 %v482
      %1016 = vmatpush2.msra.mxu0 %v481
      %1017 = vmatprep.subr.mxu0 %v480
      %1018 = vmatpush2.msra.mxu0 %v479
      %1019 = vmatprep.subr.mxu0 %v478
      %1020 = vmatpush2.msra.mxu0 %v477
      %1021 = vmatprep.subr.mxu0 %v476
      %1022 = vmatpush2.msra.mxu0 %v475
      %1023 = vmatprep.subr.mxu0 %v474
      %1024 = vmatpush2.msra.mxu0 %v473
      %1025 = vmatprep.subr.mxu0 %v472
      %1026 = vmatpush2.msra.mxu0 %v471
      %1027 = vmatprep.mubr.f32.mxu0 %v962
      %1028 = vmatmul.mubr.f32.gmra.mxu0 %v961
      %v1029 = vpop.f32.mrf.mxu0
      %v1030 = vadd.f32 0.0, %v1029
      %v1031 = vpop.f32.mrf.mxu0
      %v1032 = vadd.f32 0.0, %v1031
      %1033 = vdwg.mxu0
      %v1035 = vsel %vm594, %v1032, 0
      %1037 = vmatprep.subr.mxu0 0.0
      %1038 = vmatpush1.msra.mxu0 %v518
      %1039 = vmatprep.subr.mxu0 0.0
      %1040 = vmatpush1.msra.mxu0 %v517
      %1041 = vmatprep.subr.mxu0 0.0
      %1042 = vmatpush1.msra.mxu0 %v516
      %1043 = vmatprep.subr.mxu0 0.0
      %1044 = vmatpush1.msra.mxu0 %v515
      %1045 = vmatprep.subr.mxu0 0.0
      %1046 = vmatpush1.msra.mxu0 %v514
      %1047 = vmatprep.subr.mxu0 0.0
      %1048 = vmatpush1.msra.mxu0 %v513
      %1049 = vmatprep.subr.mxu0 0.0
      %1050 = vmatpush1.msra.mxu0 %v512
      %1051 = vmatprep.subr.mxu0 0.0
      %1052 = vmatpush1.msra.mxu0 %v511
      %1053 = vmatprep.subr.mxu0 0.0
      %1054 = vmatpush1.msra.mxu0 %v510
      %1055 = vmatprep.subr.mxu0 0.0
      %1056 = vmatpush1.msra.mxu0 %v509
      %1057 = vmatprep.subr.mxu0 0.0
      %1058 = vmatpush1.msra.mxu0 %v508
      %1059 = vmatprep.subr.mxu0 0.0
      %1060 = vmatpush1.msra.mxu0 %v507
      %1061 = vmatprep.subr.mxu0 0.0
      %1062 = vmatpush1.msra.mxu0 %v506
      %1063 = vmatprep.subr.mxu0 0.0
      %1064 = vmatpush1.msra.mxu0 %v505
      %1065 = vmatprep.subr.mxu0 0.0
      %1066 = vmatpush1.msra.mxu0 %v504
      %1067 = vmatprep.subr.mxu0 0.0
      %1068 = vmatpush1.msra.mxu0 %v503
      %1069 = vmatprep.subr.mxu0 0.0
      %1070 = vmatpush2.msra.mxu0 0.0
      %1071 = vmatprep.subr.mxu0 0.0
      %1072 = vmatpush2.msra.mxu0 0.0
      %1073 = vmatprep.subr.mxu0 0.0
      %1074 = vmatpush2.msra.mxu0 0.0
      %1075 = vmatprep.subr.mxu0 0.0
      %1076 = vmatpush2.msra.mxu0 0.0
      %1077 = vmatprep.subr.mxu0 0.0
      %1078 = vmatpush2.msra.mxu0 0.0
      %1079 = vmatprep.subr.mxu0 0.0
      %1080 = vmatpush2.msra.mxu0 0.0
      %1081 = vmatprep.subr.mxu0 0.0
      %1082 = vmatpush2.msra.mxu0 0.0
      %1083 = vmatprep.subr.mxu0 0.0
      %1084 = vmatpush2.msra.mxu0 0.0
      %1085 = vmatprep.subr.mxu0 0.0
      %1086 = vmatpush2.msra.mxu0 0.0
      %1087 = vmatprep.subr.mxu0 0.0
      %1088 = vmatpush2.msra.mxu0 0.0
      %1089 = vmatprep.subr.mxu0 0.0
      %1090 = vmatpush2.msra.mxu0 0.0
      %1091 = vmatprep.subr.mxu0 0.0
      %1092 = vmatpush2.msra.mxu0 0.0
      %1093 = vmatprep.subr.mxu0 0.0
      %1094 = vmatpush2.msra.mxu0 %v522
      %1095 = vmatprep.subr.mxu0 0.0
      %1096 = vmatpush2.msra.mxu0 %v521
      %1097 = vmatprep.subr.mxu0 0.0
      %1098 = vmatpush2.msra.mxu0 %v520
      %1099 = vmatprep.subr.mxu0 0.0
      %1100 = vmatpush2.msra.mxu0 %v519
      %1101 = vmatprep.mubr.f32.mxu0 %v1035
      %1102 = vmatmul.mubr.f32.gmra.mxu0 %v1030
      %v1103 = vpop.f32.mrf.mxu0
      %v1104 = vadd.f32 0.0, %v1103
      %v1105 = vpop.f32.mrf.mxu0
      %1106 = vdwg.mxu0
      %v1107 = vmul.f32 %v1104, 0.020408163
      %v1108 = vmul.f32 %v433, %v437
      %v1109 = vmul.f32 %v434, %v438
      %1110 = vmatprep.subr.mxu0 %v470
      %1111 = vmatpush1.msra.mxu0 %v469
      %1112 = vmatprep.subr.mxu0 %v468
      %1113 = vmatpush1.msra.mxu0 %v467
      %1114 = vmatprep.subr.mxu0 %v466
      %1115 = vmatpush1.msra.mxu0 %v465
      %1116 = vmatprep.subr.mxu0 %v464
      %1117 = vmatpush1.msra.mxu0 %v463
      %1118 = vmatprep.subr.mxu0 %v462
      %1119 = vmatpush1.msra.mxu0 %v461
      %1120 = vmatprep.subr.mxu0 %v460
      %1121 = vmatpush1.msra.mxu0 %v459
      %1122 = vmatprep.subr.mxu0 %v458
      %1123 = vmatpush1.msra.mxu0 %v457
      %1124 = vmatprep.subr.mxu0 %v456
      %1125 = vmatpush1.msra.mxu0 %v455
      %1126 = vmatprep.subr.mxu0 %v454
      %1127 = vmatpush1.msra.mxu0 %v453
      %1128 = vmatprep.subr.mxu0 %v452
      %1129 = vmatpush1.msra.mxu0 %v451
      %1130 = vmatprep.subr.mxu0 %v450
      %1131 = vmatpush1.msra.mxu0 %v449
      %1132 = vmatprep.subr.mxu0 %v448
      %1133 = vmatpush1.msra.mxu0 %v447
      %1134 = vmatprep.subr.mxu0 %v446
      %1135 = vmatpush1.msra.mxu0 %v445
      %1136 = vmatprep.subr.mxu0 %v444
      %1137 = vmatpush1.msra.mxu0 %v443
      %1138 = vmatprep.subr.mxu0 %v442
      %1139 = vmatpush1.msra.mxu0 %v441
      %1140 = vmatprep.subr.mxu0 %v440
      %1141 = vmatpush1.msra.mxu0 %v439
      %1142 = vmatprep.subr.mxu0 %v502
      %1143 = vmatpush2.msra.mxu0 %v501
      %1144 = vmatprep.subr.mxu0 %v500
      %1145 = vmatpush2.msra.mxu0 %v499
      %1146 = vmatprep.subr.mxu0 %v498
      %1147 = vmatpush2.msra.mxu0 %v497
      %1148 = vmatprep.subr.mxu0 %v496
      %1149 = vmatpush2.msra.mxu0 %v495
      %1150 = vmatprep.subr.mxu0 %v494
      %1151 = vmatpush2.msra.mxu0 %v493
      %1152 = vmatprep.subr.mxu0 %v492
      %1153 = vmatpush2.msra.mxu0 %v491
      %1154 = vmatprep.subr.mxu0 %v490
      %1155 = vmatpush2.msra.mxu0 %v489
      %1156 = vmatprep.subr.mxu0 %v488
      %1157 = vmatpush2.msra.mxu0 %v487
      %1158 = vmatprep.subr.mxu0 %v486
      %1159 = vmatpush2.msra.mxu0 %v485
      %1160 = vmatprep.subr.mxu0 %v484
      %1161 = vmatpush2.msra.mxu0 %v483
      %1162 = vmatprep.subr.mxu0 %v482
      %1163 = vmatpush2.msra.mxu0 %v481
      %1164 = vmatprep.subr.mxu0 %v480
      %1165 = vmatpush2.msra.mxu0 %v479
      %1166 = vmatprep.subr.mxu0 %v478
      %1167 = vmatpush2.msra.mxu0 %v477
      %1168 = vmatprep.subr.mxu0 %v476
      %1169 = vmatpush2.msra.mxu0 %v475
      %1170 = vmatprep.subr.mxu0 %v474
      %1171 = vmatpush2.msra.mxu0 %v473
      %1172 = vmatprep.subr.mxu0 %v472
      %1173 = vmatpush2.msra.mxu0 %v471
      %1174 = vmatprep.mubr.f32.mxu0 %v1109
      %1175 = vmatmul.mubr.f32.gmra.mxu0 %v1108
      %v1176 = vpop.f32.mrf.mxu0
      %v1177 = vadd.f32 0.0, %v1176
      %v1178 = vpop.f32.mrf.mxu0
      %v1179 = vadd.f32 0.0, %v1178
      %1180 = vdwg.mxu0
      %v1182 = vsel %vm594, %v1179, 0
      %1184 = vmatprep.subr.mxu0 0.0
      %1185 = vmatpush1.msra.mxu0 %v518
      %1186 = vmatprep.subr.mxu0 0.0
      %1187 = vmatpush1.msra.mxu0 %v517
      %1188 = vmatprep.subr.mxu0 0.0
      %1189 = vmatpush1.msra.mxu0 %v516
      %1190 = vmatprep.subr.mxu0 0.0
      %1191 = vmatpush1.msra.mxu0 %v515
      %1192 = vmatprep.subr.mxu0 0.0
      %1193 = vmatpush1.msra.mxu0 %v514
      %1194 = vmatprep.subr.mxu0 0.0
      %1195 = vmatpush1.msra.mxu0 %v513
      %1196 = vmatprep.subr.mxu0 0.0
      %1197 = vmatpush1.msra.mxu0 %v512
      %1198 = vmatprep.subr.mxu0 0.0
      %1199 = vmatpush1.msra.mxu0 %v511
      %1200 = vmatprep.subr.mxu0 0.0
      %1201 = vmatpush1.msra.mxu0 %v510
      %1202 = vmatprep.subr.mxu0 0.0
      %1203 = vmatpush1.msra.mxu0 %v509
      %1204 = vmatprep.subr.mxu0 0.0
      %1205 = vmatpush1.msra.mxu0 %v508
      %1206 = vmatprep.subr.mxu0 0.0
      %1207 = vmatpush1.msra.mxu0 %v507
      %1208 = vmatprep.subr.mxu0 0.0
      %1209 = vmatpush1.msra.mxu0 %v506
      %1210 = vmatprep.subr.mxu0 0.0
      %1211 = vmatpush1.msra.mxu0 %v505
      %1212 = vmatprep.subr.mxu0 0.0
      %1213 = vmatpush1.msra.mxu0 %v504
      %1214 = vmatprep.subr.mxu0 0.0
      %1215 = vmatpush1.msra.mxu0 %v503
      %1216 = vmatprep.subr.mxu0 0.0
      %1217 = vmatpush2.msra.mxu0 0.0
      %1218 = vmatprep.subr.mxu0 0.0
      %1219 = vmatpush2.msra.mxu0 0.0
      %1220 = vmatprep.subr.mxu0 0.0
      %1221 = vmatpush2.msra.mxu0 0.0
      %1222 = vmatprep.subr.mxu0 0.0
      %1223 = vmatpush2.msra.mxu0 0.0
      %1224 = vmatprep.subr.mxu0 0.0
      %1225 = vmatpush2.msra.mxu0 0.0
      %1226 = vmatprep.subr.mxu0 0.0
      %1227 = vmatpush2.msra.mxu0 0.0
      %1228 = vmatprep.subr.mxu0 0.0
      %1229 = vmatpush2.msra.mxu0 0.0
      %1230 = vmatprep.subr.mxu0 0.0
      %1231 = vmatpush2.msra.mxu0 0.0
      %1232 = vmatprep.subr.mxu0 0.0
      %1233 = vmatpush2.msra.mxu0 0.0
      %1234 = vmatprep.subr.mxu0 0.0
      %1235 = vmatpush2.msra.mxu0 0.0
      %1236 = vmatprep.subr.mxu0 0.0
      %1237 = vmatpush2.msra.mxu0 0.0
      %1238 = vmatprep.subr.mxu0 0.0
      %1239 = vmatpush2.msra.mxu0 0.0
      %1240 = vmatprep.subr.mxu0 0.0
      %1241 = vmatpush2.msra.mxu0 %v522
      %1242 = vmatprep.subr.mxu0 0.0
      %1243 = vmatpush2.msra.mxu0 %v521
      %1244 = vmatprep.subr.mxu0 0.0
      %1245 = vmatpush2.msra.mxu0 %v520
      %1246 = vmatprep.subr.mxu0 0.0
      %1247 = vmatpush2.msra.mxu0 %v519
      %1248 = vmatprep.mubr.f32.mxu0 %v1182
      %1249 = vmatmul.mubr.f32.gmra.mxu0 %v1177
      %v1250 = vpop.f32.mrf.mxu0
      %v1251 = vadd.f32 0.0, %v1250
      %v1252 = vpop.f32.mrf.mxu0
      %1253 = vdwg.mxu0
      %v1254 = vmul.f32 %v1251, 0.020408163
      %v1255 = vmul.f32 %v668, %v668
      %v1256 = vsub.f32 %v960, %v1255
      %v1257 = vmul.f32 %v1256, 1.0208334
      %v1258 = vmul.f32 %v813, %v813
      %v1259 = vsub.f32 %v1107, %v1258
      %v1260 = vmul.f32 %v1259, 1.0208334
      %v1261 = vmul.f32 %v668, %v813
      %v1262 = vsub.f32 %v1254, %v1261
      %v1263 = vmul.f32 %v1262, 1.0208334
      %v1264 = vadd.f32 %v668, 127.5
      %v1265 = vadd.f32 %v813, 127.5
      %v1266 = vmul.f32 %v1264, 2.0
      %v1267 = vmul.f32 %v1266, %v1265
      %v1268 = vadd.f32 %v1267, 6.5025
      %v1269 = vmul.f32 %v1263, 2.0
      %v1270 = vadd.f32 %v1269, 58.5225
      %v1271 = vmul.f32 %v1268, %v1270
      %v1272 = vmul.f32 %v1264, %v1264
      %v1273 = vmul.f32 %v1265, %v1265
      %v1274 = vadd.f32 %v1272, %v1273
      %v1275 = vadd.f32 %v1274, 6.5025
      %v1276 = vadd.f32 %v1257, %v1260
      %v1277 = vadd.f32 %v1276, 58.5225
      %v1278 = vmul.f32 %v1275, %v1277
      %v1279 = vrcp.pop %v1278
      %v1280 = vmul.f32 %v1271, %v1279
      %v1281 = vld [vmem:[#allocation3] sm:$0x1]
      %vm1282 = vcmask 818176
      %v1283 = vsel %vm1282, %v1280, 0.0
      %v1284 = vrot.slane %v1283, 4
      %v1285 = vadd.f32 %v1283, %v1284
      %v1286 = vrot.slane %v1285, 2
      %v1287 = vadd.f32 %v1285, %v1286
      %v1288 = vrot.slane %v1287, 1
      %v1289 = vadd.f32 %v1287, %v1288
      %v1290 = vadd.f32 %v1281, %v1289
      %vm1291 = vcmask 811008
      %1292 = vst.msk [vmem:[#allocation3] sm:$0x1] %vm1291, %v1290
      %p1293 = scmp.eq.s32.totalorder %s22, 1
      // Predicated region
      $region41: #{_generator_loss.1} parent=35 // pred_check
        %p1294 = pneg %p1293
      $region42: #{_generator_loss.1} parent=35 // pred_check_branch
        %1296 = sbr.rel (%p1294) target = $region44
      $region43: #{_generator_loss.1} parent=35 // pred_region
        %v1297 = vld [vmem:[#allocation2] sm:$0x3f]
        %v1299 = vlaneseq
        %v1300 = vshrl.u32 %v1299, 7
        %v1301 = vsub.s32 0, %v1300
        %v1302 = vrot.slane %v1297, %v1301
        %v1303 = vlaneseq
        %v1304 = vshrl.u32 %v1303, 7
        %v1305 = vsub.s32 1, %v1304
        %v1306 = vrot.slane %v1297, %v1305
        %v1307 = vlaneseq
        %v1308 = vshrl.u32 %v1307, 7
        %v1309 = vsub.s32 2, %v1308
        %v1310 = vrot.slane %v1297, %v1309
        %v1311 = vlaneseq
        %v1312 = vshrl.u32 %v1311, 7
        %v1313 = vsub.s32 3, %v1312
        %v1314 = vrot.slane %v1297, %v1313
        %v1315 = vlaneseq
        %v1316 = vshrl.u32 %v1315, 7
        %v1317 = vsub.s32 4, %v1316
        %v1318 = vrot.slane %v1297, %v1317
        %v1319 = vlaneseq
        %v1320 = vshrl.u32 %v1319, 7
        %v1321 = vsub.s32 5, %v1320
        %v1322 = vrot.slane %v1297, %v1321
        %vm1329 = vcmask 1040384
        %v1330 = vsel %vm1329, %v1302, 0.0
        %v1331 = vsel %vm1329, %v1306, 0.0
        %v1332 = vadd.f32 %v1330, %v1331
        %v1333 = vsel %vm1329, %v1310, 0.0
        %v1334 = vadd.f32 %v1332, %v1333
        %v1335 = vsel %vm1329, %v1314, 0.0
        %v1336 = vadd.f32 %v1334, %v1335
        %v1337 = vsel %vm1329, %v1318, 0.0
        %v1338 = vadd.f32 %v1336, %v1337
        %v1339 = vsel %vm1329, %v1322, 0.0
        %v1340 = vadd.f32 %v1338, %v1339
        %1341 = vadd.xlane.f32.xlu0 %v1340
        %v1342 = vpop.xlane.xlu0 %1341
        %v1343 = vrot.slane %v1342, 4
        %v1344 = vadd.f32 %v1342, %v1343
        %v1345 = vrot.slane %v1344, 2
        %v1346 = vadd.f32 %v1344, %v1345
        %v1347 = vrot.slane %v1346, 1
        %v1348 = vadd.f32 %v1346, %v1347
        %s1349 = vtos %v1348
        %s1350 = smul.f32 %s1349, 4.0690105e-05
        %v1351 = vld [vmem:[#allocation3] sm:$0x1]
        %v1352 = vsel %vm1291, %v1351, 0.0
        %1353 = vadd.xlane.f32.xlu0 %v1352
        %v1354 = vpop.xlane.xlu0 %1353
        %v1355 = vrot.slane %v1354, 4
        %v1356 = vadd.f32 %v1354, %v1355
        %v1357 = vrot.slane %v1356, 2
        %v1358 = vadd.f32 %v1356, %v1357
        %v1359 = vrot.slane %v1358, 1
        %v1360 = vadd.f32 %v1358, %v1359
        %s1361 = vtos %v1360
        %s1362 = smul.f32 %s1361, 0.0003125
        %v1363 = vstv %s1350
        %1364 = vst [vmem:[%s289] sm:$0xff] %v1363
        %v1365 = vstv %s1362
        %1366 = vst [vmem:[%s293] sm:$0xff] %v1365
      $region44: #{_generator_loss.1} parent=35 // pred_fallthru
        _
      %p1367 = scmp.lt.s32.totalorder %s21, 1
      %s1368 = scalar_select %p1367, %s21, 1
      %s1369 = smul.addr %s1368, 8
      %s1370 = scalar_lea.vmem %s4, %s1369
      %p1371 = scmp.lt.s32.totalorder %s21, 1
      %s1372 = scalar_select %p1371, %s21, 1
      %s1373 = smul.addr %s1372, 8
      %s1374 = scalar_lea.vmem %s5, %s1373
      // Predicated region
      $region45: #{_generator_loss.1} parent=35 // pred_check
        %p1375 = pneg %p149
      $region46: #{_generator_loss.1} parent=35 // pred_check_branch
        %1377 = sbr.rel (%p1375) target = $region48
      $region47: #{_generator_loss.1} parent=35 // pred_region
        _
      $region48: #{_generator_loss.1} parent=35 // pred_fallthru
        _
      // Predicated region
      $region49: #{_generator_loss.1} parent=35 // pred_check
        %p1378 = pneg %p175
      $region50: #{_generator_loss.1} parent=35 // pred_check_branch
        %1380 = sbr.rel (%p1378) target = $region52
      $region51: #{_generator_loss.1} parent=35 // pred_region
        _
      $region52: #{_generator_loss.1} parent=35 // pred_fallthru
        _
    $region36: #{_generator_loss.1} parent=5 // pred_fallthru
      _
    %p1381 = scmp.le.s32.totalorder 2, %s12
    // Predicated region
    $region53: #{_generator_loss.1} parent=5 // pred_check
      %p1382 = pneg %p1381
    $region54: #{_generator_loss.1} parent=5 // pred_check_branch
      %1384 = sbr.rel (%p1382) target = $region56
    $region55: #{_generator_loss.1} parent=5 // pred_region
      %s1385 = ssub.s32 %s12, 2
      // Predicated region
      $region57: #{_generator_loss.1} parent=55 // pred_check
        %p1386 = pneg %p155
      $region58: #{_generator_loss.1} parent=55 // pred_check_branch
        %1388 = sbr.rel (%p1386) target = $region60
      $region59: #{_generator_loss.1} parent=55 // pred_region
        %p1389 = scmp.lt.s32.totalorder %s23, 1
        %s1390 = scalar_select %p1389, %s23, 1
        %s1391 = smul.addr %s1390, 8
        %s1392 = scalar_lea.vmem %s4, %s1391
      $region60: #{_generator_loss.1} parent=55 // pred_fallthru
        _
      // Predicated region
      $region61: #{_generator_loss.1} parent=55 // pred_check
        %p1393 = pneg %p181
      $region62: #{_generator_loss.1} parent=55 // pred_check_branch
        %1395 = sbr.rel (%p1393) target = $region64
      $region63: #{_generator_loss.1} parent=55 // pred_region
        %p1396 = scmp.lt.s32.totalorder %s23, 1
        %s1397 = scalar_select %p1396, %s23, 1
        %s1398 = smul.addr %s1397, 8
        %s1399 = scalar_lea.vmem %s5, %s1398
      $region64: #{_generator_loss.1} parent=55 // pred_fallthru
        _
    $region56: #{_generator_loss.1} parent=5 // pred_fallthru
      _
  $region6: #{_generator_loss.1} parent=0 // loop_footer
    %s16 = sadd.s32 1, %s12
  $region7: #{_generator_loss.1} parent=0 // loop_footer_branch
    %11 = sbr.rel target = $region3
  $region8: #{_generator_loss.1} parent=0 // loop_exit
    _

</llo_original>
